<compile_context>
chip_gen: v7x
topology: tpu7x:2x2x1
jax: 0.10.0
libtpu: 0.0.40
codegen_flags: <defaults>
</compile_context>

<pallas_src>
import math
import functools

import jax
import jax.numpy as jnp
from jax import lax
from jax.experimental import pallas as pl
from jax.experimental.pallas import tpu as pltpu


def _attn_kernel(x_ref, wq_ref, wk_ref, wv_ref, bq_ref, bk_ref, bv_ref,
                 wp_ref, bp_ref, bias_ref, o_ref, *, T, C, n_head):
    hd = C // n_head

    x = x_ref[...]                                            # (T, C) bf16

    # Projections: bf16 MXU operands, f32 accumulation, f32 bias add, then a single
    # bf16 cast per tensor (q/k/v are never kept live in f32). Scale for the scores
    # is already folded into wq/bq by prepare_params().
    q = (jnp.dot(x, wq_ref[...], preferred_element_type=jnp.float32)
         + bq_ref[...]).astype(jnp.bfloat16)
    k = (jnp.dot(x, wk_ref[...], preferred_element_type=jnp.float32)
         + bk_ref[...]).astype(jnp.bfloat16)
    v = (jnp.dot(x, wv_ref[...], preferred_element_type=jnp.float32)
         + bv_ref[...]).astype(jnp.bfloat16)

    mask_bias = bias_ref[...]                                 # (T, T) f32: 0 or -1e30

    ys = []
    for h in range(n_head):                                   # small static loop (T=8)
        lo, hi = h * hd, (h + 1) * hd
        qh = q[:, lo:hi]                                      # (T, hd) bf16
        kh = k[:, lo:hi]
        vh = v[:, lo:hi]

        # scores = q @ k^T (contract last dims; no transpose materialized).
        s = lax.dot_general(qh, kh, (((1,), (1,)), ((), ())),
                            preferred_element_type=jnp.float32)   # (T, T) f32
        s = s + mask_bias                                     # additive causal mask

        m = jnp.max(s, axis=-1, keepdims=True)
        e = jnp.exp(s - m)                                    # f32 exp (v5e: no bf16 EUP)
        l = jnp.sum(e, axis=-1, keepdims=True)
        p = (e * pl.reciprocal(l, approx=True)).astype(jnp.bfloat16)

        # attn dropout: pdrop == 0.0 -> identity.
        yh = jnp.dot(p, vh, preferred_element_type=jnp.float32)  # (T, hd)
        ys.append(yh.astype(jnp.bfloat16))

    # Merge heads along lanes in-register (no masked partial-column scratch stores),
    # then a single (T, C) @ (C, C) output projection.
    y = jnp.concatenate(ys, axis=-1)                          # (T, C) bf16
    out = jnp.dot(y, wp_ref[...], preferred_element_type=jnp.float32) + bp_ref[...]
    # proj dropout: pdrop == 0.0 -> identity.
    o_ref[...] = out.astype(o_ref.dtype)


def prepare_params(wqkv, bqkv, wproj, bproj, *, dim, n_head):
    """One-time parameter prep: split fused qkv, fold 1/sqrt(hd) into Wq/bq, cast bf16."""
    C = dim
    hd = C // n_head
    scale = jnp.float32(1.0 / math.sqrt(hd))
    wq = (wqkv[:, 0 * C:1 * C] * scale).astype(jnp.bfloat16)
    wk = wqkv[:, 1 * C:2 * C].astype(jnp.bfloat16)
    wv = wqkv[:, 2 * C:3 * C].astype(jnp.bfloat16)
    bq = (bqkv[0 * C:1 * C] * scale).reshape(1, C).astype(jnp.float32)
    bk = bqkv[1 * C:2 * C].reshape(1, C).astype(jnp.float32)
    bv = bqkv[2 * C:3 * C].reshape(1, C).astype(jnp.float32)
    wp = wproj.astype(jnp.bfloat16)
    bp = bproj.reshape(1, C).astype(jnp.float32)
    return (wq, wk, wv, bq, bk, bv, wp, bp)


def self_attention_fwd(x, params, *, n_head):
    """x: (B, T, C) float32; params from prepare_params()."""
    B, T, C = x.shape
    hd = C // n_head
    wq, wk, wv, bq, bk, bv, wp, bp = params

    # Additive causal mask computed outside the kernel (finite -1e30: every row keeps
    # at least its diagonal unmasked, so softmax stays well-defined).
    causal = jnp.tril(jnp.ones((T, T), dtype=bool))
    mask_bias = jnp.where(causal, jnp.float32(0.0), jnp.float32(-1e30))

    x_bf16 = x.astype(jnp.bfloat16)

    flops = 8 * B * T * C * C + 4 * n_head * B * T * T * hd
    transcendentals = n_head * B * T * T
    bytes_accessed = (B * T * C * 2            # x (bf16 in)
                      + B * T * C * 4          # out (f32)
                      + 4 * C * C * 2          # wq, wk, wv, wp (bf16)
                      + 4 * C * 4              # biases (f32)
                      + T * T * 4)             # mask bias (f32)

    kernel = functools.partial(_attn_kernel, T=T, C=C, n_head=n_head)
    out = pl.pallas_call(
        kernel,
        out_shape=jax.ShapeDtypeStruct((B, T, C), x.dtype),
        grid=(B,),
        in_specs=[
            pl.BlockSpec((None, T, C), lambda b: (b, 0, 0)),   # x slab per batch
            pl.BlockSpec((C, C), lambda b: (0, 0)),            # wq (resident)
            pl.BlockSpec((C, C), lambda b: (0, 0)),            # wk
            pl.BlockSpec((C, C), lambda b: (0, 0)),            # wv
            pl.BlockSpec((1, C), lambda b: (0, 0)),            # bq
            pl.BlockSpec((1, C), lambda b: (0, 0)),            # bk
            pl.BlockSpec((1, C), lambda b: (0, 0)),            # bv
            pl.BlockSpec((C, C), lambda b: (0, 0)),            # wproj
            pl.BlockSpec((1, C), lambda b: (0, 0)),            # bproj
            pl.BlockSpec((T, T), lambda b: (0, 0)),            # additive causal mask
        ],
        out_specs=pl.BlockSpec((None, T, C), lambda b: (b, 0, 0)),
        compiler_params=pltpu.CompilerParams(
            dimension_semantics=("parallel",)),                # batch across TCs (v7x)
        cost_estimate=pl.CostEstimate(flops=flops,
                                      transcendentals=transcendentals,
                                      bytes_accessed=bytes_accessed),
    )(x_bf16, wq, wk, wv, bq, bk, bv, wp, bp, mask_bias)
    return out


def _reference(x, wqkv, bqkv, wproj, bproj, n_head):
    B, T, C = x.shape
    hd = C // n_head
    qkv = x.astype(jnp.float32) @ wqkv + bqkv
    q, k, v = jnp.split(qkv, 3, axis=-1)
    q = q.reshape(B, T, n_head, hd).transpose(0, 2, 1, 3)
    k = k.reshape(B, T, n_head, hd).transpose(0, 2, 1, 3)
    v = v.reshape(B, T, n_head, hd).transpose(0, 2, 1, 3)
    att = jnp.einsum('bhtd,bhsd->bhts', q, k) / math.sqrt(hd)
    mask = jnp.tril(jnp.ones((T, T), dtype=bool))
    att = jnp.where(mask[None, None], att, -jnp.inf)
    att = jax.nn.softmax(att, axis=-1)
    y = jnp.einsum('bhts,bhsd->bhtd', att, v)
    y = y.transpose(0, 2, 1, 3).reshape(B, T, C)
    return y @ wproj + bproj


if __name__ == "__main__":
    B, T, C, n_head = 2, 8, 48, 12    # dim=48, n_head=12 -> head_dim=4

    key = jax.random.PRNGKey(0)
    kx, kw1, kb1, kw2, kb2 = jax.random.split(key, 5)

    x = jax.random.normal(kx, (B, T, C), dtype=jnp.float32)
    bound = 1.0 / math.sqrt(C)
    wqkv = jax.random.uniform(kw1, (C, 3 * C), jnp.float32, -bound, bound)
    bqkv = jax.random.uniform(kb1, (3 * C,), jnp.float32, -bound, bound)
    wproj = jax.random.uniform(kw2, (C, C), jnp.float32, -bound, bound)
    bproj = jax.random.uniform(kb2, (C,), jnp.float32, -bound, bound)

    # One-time weight prep (split / scale-fold / bf16 cast) — not per forward call.
    params = prepare_params(wqkv, bqkv, wproj, bproj, dim=C, n_head=n_head)

    out = self_attention_fwd(x, params, n_head=n_head)
    out = jax.block_until_ready(out)

    ref = _reference(x, wqkv, bqkv, wproj, bproj, n_head)
    assert out.shape == (B, T, C)
    # bf16 MXU operands (f32 accumulation) -> loosened tolerance vs the f32 reference.
    assert jnp.allclose(out, ref, atol=5e-2, rtol=5e-2), "mismatch vs reference"

    print("KERNEL_OK")
</pallas_src>

<mosaic_0001>
module attributes {stable_mosaic.version = 11 : i64} {
  func.func @_attn_kernel(%arg0: i32, %arg1: memref<1x8x48xbf16, #tpu.memory_space<vmem>>, %arg2: memref<48x48xbf16, #tpu.memory_space<vmem>>, %arg3: memref<48x48xbf16, #tpu.memory_space<vmem>>, %arg4: memref<48x48xbf16, #tpu.memory_space<vmem>>, %arg5: memref<1x48xf32, #tpu.memory_space<vmem>>, %arg6: memref<1x48xf32, #tpu.memory_space<vmem>>, %arg7: memref<1x48xf32, #tpu.memory_space<vmem>>, %arg8: memref<48x48xbf16, #tpu.memory_space<vmem>>, %arg9: memref<1x48xf32, #tpu.memory_space<vmem>>, %arg10: memref<8x8xf32, #tpu.memory_space<vmem>>, %arg11: memref<1x8x48xf32, #tpu.memory_space<vmem>>) attributes {dimension_semantics = [#tpu.dimension_semantics<parallel>], iteration_bounds = array<i64: 2>, scalar_prefetch = 0 : i64, scratch_operands = 0 : i64, tpu.core_type = #tpu.core_type<tc>, window_params = [{transform_indices = @transform_0, window_bounds = array<i64: 1, 8, 48>}, {pipeline_mode = #tpu.pipeline_mode<synchronous>, transform_indices = @transform_1, window_bounds = array<i64: 48, 48>}, {pipeline_mode = #tpu.pipeline_mode<synchronous>, transform_indices = @transform_2, window_bounds = array<i64: 48, 48>}, {pipeline_mode = #tpu.pipeline_mode<synchronous>, transform_indices = @transform_3, window_bounds = array<i64: 48, 48>}, {pipeline_mode = #tpu.pipeline_mode<synchronous>, transform_indices = @transform_4, window_bounds = array<i64: 1, 48>}, {pipeline_mode = #tpu.pipeline_mode<synchronous>, transform_indices = @transform_5, window_bounds = array<i64: 1, 48>}, {pipeline_mode = #tpu.pipeline_mode<synchronous>, transform_indices = @transform_6, window_bounds = array<i64: 1, 48>}, {pipeline_mode = #tpu.pipeline_mode<synchronous>, transform_indices = @transform_7, window_bounds = array<i64: 48, 48>}, {pipeline_mode = #tpu.pipeline_mode<synchronous>, transform_indices = @transform_8, window_bounds = array<i64: 1, 48>}, {pipeline_mode = #tpu.pipeline_mode<synchronous>, transform_indices = @transform_9, window_bounds = array<i64: 8, 8>}, {transform_indices = @transform_10, window_bounds = array<i64: 1, 8, 48>}]} {
    %c0 = arith.constant 0 : index
    %c0_0 = arith.constant 0 : index
    %c0_1 = arith.constant 0 : index
    %0 = vector.load %arg1[%c0, %c0_0, %c0_1] : memref<1x8x48xbf16, #tpu.memory_space<vmem>>, vector<1x8x48xbf16>
    %1 = vector.shape_cast %0 : vector<1x8x48xbf16> to vector<8x48xbf16>
    %c0_2 = arith.constant 0 : index
    %c0_3 = arith.constant 0 : index
    %2 = vector.load %arg2[%c0_2, %c0_3] : memref<48x48xbf16, #tpu.memory_space<vmem>>, vector<48x48xbf16>
    %cst = arith.constant dense<0.000000e+00> : vector<8x48xf32>
    %3 = tpu.matmul %1, %2, %cst {dimension_numbers = #tpu.dot_dimension_numbers<[1], [0], [0], [1], [0, 0, 1, 1], [], []>} : vector<8x48xbf16>, vector<48x48xbf16>, vector<8x48xf32> -> vector<8x48xf32>
    %c0_4 = arith.constant 0 : index
    %c0_5 = arith.constant 0 : index
    %4 = vector.load %arg5[%c0_4, %c0_5] : memref<1x48xf32, #tpu.memory_space<vmem>>, vector<1x48xf32>
    %5 = vector.broadcast %4 : vector<1x48xf32> to vector<8x48xf32>
    %6 = arith.addf %3, %5 : vector<8x48xf32>
    %7 = arith.truncf %6 : vector<8x48xf32> to vector<8x48xbf16>
    %c0_6 = arith.constant 0 : index
    %c0_7 = arith.constant 0 : index
    %8 = vector.load %arg3[%c0_6, %c0_7] : memref<48x48xbf16, #tpu.memory_space<vmem>>, vector<48x48xbf16>
    %cst_8 = arith.constant dense<0.000000e+00> : vector<8x48xf32>
    %9 = tpu.matmul %1, %8, %cst_8 {dimension_numbers = #tpu.dot_dimension_numbers<[1], [0], [0], [1], [0, 0, 1, 1], [], []>} : vector<8x48xbf16>, vector<48x48xbf16>, vector<8x48xf32> -> vector<8x48xf32>
    %c0_9 = arith.constant 0 : index
    %c0_10 = arith.constant 0 : index
    %10 = vector.load %arg6[%c0_9, %c0_10] : memref<1x48xf32, #tpu.memory_space<vmem>>, vector<1x48xf32>
    %11 = vector.broadcast %10 : vector<1x48xf32> to vector<8x48xf32>
    %12 = arith.addf %9, %11 : vector<8x48xf32>
    %13 = arith.truncf %12 : vector<8x48xf32> to vector<8x48xbf16>
    %c0_11 = arith.constant 0 : index
    %c0_12 = arith.constant 0 : index
    %14 = vector.load %arg4[%c0_11, %c0_12] : memref<48x48xbf16, #tpu.memory_space<vmem>>, vector<48x48xbf16>
    %cst_13 = arith.constant dense<0.000000e+00> : vector<8x48xf32>
    %15 = tpu.matmul %1, %14, %cst_13 {dimension_numbers = #tpu.dot_dimension_numbers<[1], [0], [0], [1], [0, 0, 1, 1], [], []>} : vector<8x48xbf16>, vector<48x48xbf16>, vector<8x48xf32> -> vector<8x48xf32>
    %c0_14 = arith.constant 0 : index
    %c0_15 = arith.constant 0 : index
    %16 = vector.load %arg7[%c0_14, %c0_15] : memref<1x48xf32, #tpu.memory_space<vmem>>, vector<1x48xf32>
    %17 = vector.broadcast %16 : vector<1x48xf32> to vector<8x48xf32>
    %18 = arith.addf %15, %17 : vector<8x48xf32>
    %19 = arith.truncf %18 : vector<8x48xf32> to vector<8x48xbf16>
    %c0_16 = arith.constant 0 : index
    %c0_17 = arith.constant 0 : index
    %20 = vector.load %arg10[%c0_16, %c0_17] : memref<8x8xf32, #tpu.memory_space<vmem>>, vector<8x8xf32>
    %21 = vector.extract_strided_slice %7 {offsets = [0, 0], sizes = [8, 4], strides = [1, 1]} : vector<8x48xbf16> to vector<8x4xbf16>
    %22 = vector.extract_strided_slice %13 {offsets = [0, 0], sizes = [8, 4], strides = [1, 1]} : vector<8x48xbf16> to vector<8x4xbf16>
    %23 = vector.extract_strided_slice %19 {offsets = [0, 0], sizes = [8, 4], strides = [1, 1]} : vector<8x48xbf16> to vector<8x4xbf16>
    %cst_18 = arith.constant dense<0.000000e+00> : vector<8x8xf32>
    %24 = tpu.matmul %21, %22, %cst_18 {dimension_numbers = #tpu.dot_dimension_numbers<[1], [1], [0], [0], [0, 0, 1, 0], [], []>} : vector<8x4xbf16>, vector<8x4xbf16>, vector<8x8xf32> -> vector<8x8xf32>
    %25 = arith.addf %24, %20 : vector<8x8xf32>
    %cst_19 = arith.constant dense<0xFF800000> : vector<8xf32>
    %26 = vector.multi_reduction <maximumf>, %25, %cst_19 [1] : vector<8x8xf32> to vector<8xf32>
    %27 = vector.shape_cast %26 : vector<8xf32> to vector<8x1xf32>
    %28 = vector.broadcast %27 : vector<8x1xf32> to vector<8x8xf32>
    %29 = arith.subf %25, %28 : vector<8x8xf32>
    %30 = math.exp %29 : vector<8x8xf32>
    %cst_20 = arith.constant dense<0.000000e+00> : vector<8xf32>
    %31 = vector.multi_reduction <add>, %30, %cst_20 [1] : vector<8x8xf32> to vector<8xf32>
    %32 = vector.shape_cast %31 : vector<8xf32> to vector<8x1xf32>
    %33 = tpu.reciprocal %32 {approx = true} : vector<8x1xf32> -> vector<8x1xf32>
    %34 = vector.broadcast %33 : vector<8x1xf32> to vector<8x8xf32>
    %35 = arith.mulf %30, %34 : vector<8x8xf32>
    %36 = arith.truncf %35 : vector<8x8xf32> to vector<8x8xbf16>
    %cst_21 = arith.constant dense<0.000000e+00> : vector<8x4xf32>
    %37 = tpu.matmul %36, %23, %cst_21 {dimension_numbers = #tpu.dot_dimension_numbers<[1], [0], [0], [1], [0, 0, 1, 1], [], []>} : vector<8x8xbf16>, vector<8x4xbf16>, vector<8x4xf32> -> vector<8x4xf32>
    %38 = arith.truncf %37 : vector<8x4xf32> to vector<8x4xbf16>
    %39 = vector.extract_strided_slice %7 {offsets = [0, 4], sizes = [8, 4], strides = [1, 1]} : vector<8x48xbf16> to vector<8x4xbf16>
    %40 = vector.extract_strided_slice %13 {offsets = [0, 4], sizes = [8, 4], strides = [1, 1]} : vector<8x48xbf16> to vector<8x4xbf16>
    %41 = vector.extract_strided_slice %19 {offsets = [0, 4], sizes = [8, 4], strides = [1, 1]} : vector<8x48xbf16> to vector<8x4xbf16>
    %cst_22 = arith.constant dense<0.000000e+00> : vector<8x8xf32>
    %42 = tpu.matmul %39, %40, %cst_22 {dimension_numbers = #tpu.dot_dimension_numbers<[1], [1], [0], [0], [0, 0, 1, 0], [], []>} : vector<8x4xbf16>, vector<8x4xbf16>, vector<8x8xf32> -> vector<8x8xf32>
    %43 = arith.addf %42, %20 : vector<8x8xf32>
    %cst_23 = arith.constant dense<0xFF800000> : vector<8xf32>
    %44 = vector.multi_reduction <maximumf>, %43, %cst_23 [1] : vector<8x8xf32> to vector<8xf32>
    %45 = vector.shape_cast %44 : vector<8xf32> to vector<8x1xf32>
    %46 = vector.broadcast %45 : vector<8x1xf32> to vector<8x8xf32>
    %47 = arith.subf %43, %46 : vector<8x8xf32>
    %48 = math.exp %47 : vector<8x8xf32>
    %cst_24 = arith.constant dense<0.000000e+00> : vector<8xf32>
    %49 = vector.multi_reduction <add>, %48, %cst_24 [1] : vector<8x8xf32> to vector<8xf32>
    %50 = vector.shape_cast %49 : vector<8xf32> to vector<8x1xf32>
    %51 = tpu.reciprocal %50 {approx = true} : vector<8x1xf32> -> vector<8x1xf32>
    %52 = vector.broadcast %51 : vector<8x1xf32> to vector<8x8xf32>
    %53 = arith.mulf %48, %52 : vector<8x8xf32>
    %54 = arith.truncf %53 : vector<8x8xf32> to vector<8x8xbf16>
    %cst_25 = arith.constant dense<0.000000e+00> : vector<8x4xf32>
    %55 = tpu.matmul %54, %41, %cst_25 {dimension_numbers = #tpu.dot_dimension_numbers<[1], [0], [0], [1], [0, 0, 1, 1], [], []>} : vector<8x8xbf16>, vector<8x4xbf16>, vector<8x4xf32> -> vector<8x4xf32>
    %56 = arith.truncf %55 : vector<8x4xf32> to vector<8x4xbf16>
    %57 = vector.extract_strided_slice %7 {offsets = [0, 8], sizes = [8, 4], strides = [1, 1]} : vector<8x48xbf16> to vector<8x4xbf16>
    %58 = vector.extract_strided_slice %13 {offsets = [0, 8], sizes = [8, 4], strides = [1, 1]} : vector<8x48xbf16> to vector<8x4xbf16>
    %59 = vector.extract_strided_slice %19 {offsets = [0, 8], sizes = [8, 4], strides = [1, 1]} : vector<8x48xbf16> to vector<8x4xbf16>
    %cst_26 = arith.constant dense<0.000000e+00> : vector<8x8xf32>
    %60 = tpu.matmul %57, %58, %cst_26 {dimension_numbers = #tpu.dot_dimension_numbers<[1], [1], [0], [0], [0, 0, 1, 0], [], []>} : vector<8x4xbf16>, vector<8x4xbf16>, vector<8x8xf32> -> vector<8x8xf32>
    %61 = arith.addf %60, %20 : vector<8x8xf32>
    %cst_27 = arith.constant dense<0xFF800000> : vector<8xf32>
    %62 = vector.multi_reduction <maximumf>, %61, %cst_27 [1] : vector<8x8xf32> to vector<8xf32>
    %63 = vector.shape_cast %62 : vector<8xf32> to vector<8x1xf32>
    %64 = vector.broadcast %63 : vector<8x1xf32> to vector<8x8xf32>
    %65 = arith.subf %61, %64 : vector<8x8xf32>
    %66 = math.exp %65 : vector<8x8xf32>
    %cst_28 = arith.constant dense<0.000000e+00> : vector<8xf32>
    %67 = vector.multi_reduction <add>, %66, %cst_28 [1] : vector<8x8xf32> to vector<8xf32>
    %68 = vector.shape_cast %67 : vector<8xf32> to vector<8x1xf32>
    %69 = tpu.reciprocal %68 {approx = true} : vector<8x1xf32> -> vector<8x1xf32>
    %70 = vector.broadcast %69 : vector<8x1xf32> to vector<8x8xf32>
    %71 = arith.mulf %66, %70 : vector<8x8xf32>
    %72 = arith.truncf %71 : vector<8x8xf32> to vector<8x8xbf16>
    %cst_29 = arith.constant dense<0.000000e+00> : vector<8x4xf32>
    %73 = tpu.matmul %72, %59, %cst_29 {dimension_numbers = #tpu.dot_dimension_numbers<[1], [0], [0], [1], [0, 0, 1, 1], [], []>} : vector<8x8xbf16>, vector<8x4xbf16>, vector<8x4xf32> -> vector<8x4xf32>
    %74 = arith.truncf %73 : vector<8x4xf32> to vector<8x4xbf16>
    %75 = vector.extract_strided_slice %7 {offsets = [0, 12], sizes = [8, 4], strides = [1, 1]} : vector<8x48xbf16> to vector<8x4xbf16>
    %76 = vector.extract_strided_slice %13 {offsets = [0, 12], sizes = [8, 4], strides = [1, 1]} : vector<8x48xbf16> to vector<8x4xbf16>
    %77 = vector.extract_strided_slice %19 {offsets = [0, 12], sizes = [8, 4], strides = [1, 1]} : vector<8x48xbf16> to vector<8x4xbf16>
    %cst_30 = arith.constant dense<0.000000e+00> : vector<8x8xf32>
    %78 = tpu.matmul %75, %76, %cst_30 {dimension_numbers = #tpu.dot_dimension_numbers<[1], [1], [0], [0], [0, 0, 1, 0], [], []>} : vector<8x4xbf16>, vector<8x4xbf16>, vector<8x8xf32> -> vector<8x8xf32>
    %79 = arith.addf %78, %20 : vector<8x8xf32>
    %cst_31 = arith.constant dense<0xFF800000> : vector<8xf32>
    %80 = vector.multi_reduction <maximumf>, %79, %cst_31 [1] : vector<8x8xf32> to vector<8xf32>
    %81 = vector.shape_cast %80 : vector<8xf32> to vector<8x1xf32>
    %82 = vector.broadcast %81 : vector<8x1xf32> to vector<8x8xf32>
    %83 = arith.subf %79, %82 : vector<8x8xf32>
    %84 = math.exp %83 : vector<8x8xf32>
    %cst_32 = arith.constant dense<0.000000e+00> : vector<8xf32>
    %85 = vector.multi_reduction <add>, %84, %cst_32 [1] : vector<8x8xf32> to vector<8xf32>
    %86 = vector.shape_cast %85 : vector<8xf32> to vector<8x1xf32>
    %87 = tpu.reciprocal %86 {approx = true} : vector<8x1xf32> -> vector<8x1xf32>
    %88 = vector.broadcast %87 : vector<8x1xf32> to vector<8x8xf32>
    %89 = arith.mulf %84, %88 : vector<8x8xf32>
    %90 = arith.truncf %89 : vector<8x8xf32> to vector<8x8xbf16>
    %cst_33 = arith.constant dense<0.000000e+00> : vector<8x4xf32>
    %91 = tpu.matmul %90, %77, %cst_33 {dimension_numbers = #tpu.dot_dimension_numbers<[1], [0], [0], [1], [0, 0, 1, 1], [], []>} : vector<8x8xbf16>, vector<8x4xbf16>, vector<8x4xf32> -> vector<8x4xf32>
    %92 = arith.truncf %91 : vector<8x4xf32> to vector<8x4xbf16>
    %93 = vector.extract_strided_slice %7 {offsets = [0, 16], sizes = [8, 4], strides = [1, 1]} : vector<8x48xbf16> to vector<8x4xbf16>
    %94 = vector.extract_strided_slice %13 {offsets = [0, 16], sizes = [8, 4], strides = [1, 1]} : vector<8x48xbf16> to vector<8x4xbf16>
    %95 = vector.extract_strided_slice %19 {offsets = [0, 16], sizes = [8, 4], strides = [1, 1]} : vector<8x48xbf16> to vector<8x4xbf16>
    %cst_34 = arith.constant dense<0.000000e+00> : vector<8x8xf32>
    %96 = tpu.matmul %93, %94, %cst_34 {dimension_numbers = #tpu.dot_dimension_numbers<[1], [1], [0], [0], [0, 0, 1, 0], [], []>} : vector<8x4xbf16>, vector<8x4xbf16>, vector<8x8xf32> -> vector<8x8xf32>
    %97 = arith.addf %96, %20 : vector<8x8xf32>
    %cst_35 = arith.constant dense<0xFF800000> : vector<8xf32>
    %98 = vector.multi_reduction <maximumf>, %97, %cst_35 [1] : vector<8x8xf32> to vector<8xf32>
    %99 = vector.shape_cast %98 : vector<8xf32> to vector<8x1xf32>
    %100 = vector.broadcast %99 : vector<8x1xf32> to vector<8x8xf32>
    %101 = arith.subf %97, %100 : vector<8x8xf32>
    %102 = math.exp %101 : vector<8x8xf32>
    %cst_36 = arith.constant dense<0.000000e+00> : vector<8xf32>
    %103 = vector.multi_reduction <add>, %102, %cst_36 [1] : vector<8x8xf32> to vector<8xf32>
    %104 = vector.shape_cast %103 : vector<8xf32> to vector<8x1xf32>
    %105 = tpu.reciprocal %104 {approx = true} : vector<8x1xf32> -> vector<8x1xf32>
    %106 = vector.broadcast %105 : vector<8x1xf32> to vector<8x8xf32>
    %107 = arith.mulf %102, %106 : vector<8x8xf32>
    %108 = arith.truncf %107 : vector<8x8xf32> to vector<8x8xbf16>
    %cst_37 = arith.constant dense<0.000000e+00> : vector<8x4xf32>
    %109 = tpu.matmul %108, %95, %cst_37 {dimension_numbers = #tpu.dot_dimension_numbers<[1], [0], [0], [1], [0, 0, 1, 1], [], []>} : vector<8x8xbf16>, vector<8x4xbf16>, vector<8x4xf32> -> vector<8x4xf32>
    %110 = arith.truncf %109 : vector<8x4xf32> to vector<8x4xbf16>
    %111 = vector.extract_strided_slice %7 {offsets = [0, 20], sizes = [8, 4], strides = [1, 1]} : vector<8x48xbf16> to vector<8x4xbf16>
    %112 = vector.extract_strided_slice %13 {offsets = [0, 20], sizes = [8, 4], strides = [1, 1]} : vector<8x48xbf16> to vector<8x4xbf16>
    %113 = vector.extract_strided_slice %19 {offsets = [0, 20], sizes = [8, 4], strides = [1, 1]} : vector<8x48xbf16> to vector<8x4xbf16>
    %cst_38 = arith.constant dense<0.000000e+00> : vector<8x8xf32>
    %114 = tpu.matmul %111, %112, %cst_38 {dimension_numbers = #tpu.dot_dimension_numbers<[1], [1], [0], [0], [0, 0, 1, 0], [], []>} : vector<8x4xbf16>, vector<8x4xbf16>, vector<8x8xf32> -> vector<8x8xf32>
    %115 = arith.addf %114, %20 : vector<8x8xf32>
    %cst_39 = arith.constant dense<0xFF800000> : vector<8xf32>
    %116 = vector.multi_reduction <maximumf>, %115, %cst_39 [1] : vector<8x8xf32> to vector<8xf32>
    %117 = vector.shape_cast %116 : vector<8xf32> to vector<8x1xf32>
    %118 = vector.broadcast %117 : vector<8x1xf32> to vector<8x8xf32>
    %119 = arith.subf %115, %118 : vector<8x8xf32>
    %120 = math.exp %119 : vector<8x8xf32>
    %cst_40 = arith.constant dense<0.000000e+00> : vector<8xf32>
    %121 = vector.multi_reduction <add>, %120, %cst_40 [1] : vector<8x8xf32> to vector<8xf32>
    %122 = vector.shape_cast %121 : vector<8xf32> to vector<8x1xf32>
    %123 = tpu.reciprocal %122 {approx = true} : vector<8x1xf32> -> vector<8x1xf32>
    %124 = vector.broadcast %123 : vector<8x1xf32> to vector<8x8xf32>
    %125 = arith.mulf %120, %124 : vector<8x8xf32>
    %126 = arith.truncf %125 : vector<8x8xf32> to vector<8x8xbf16>
    %cst_41 = arith.constant dense<0.000000e+00> : vector<8x4xf32>
    %127 = tpu.matmul %126, %113, %cst_41 {dimension_numbers = #tpu.dot_dimension_numbers<[1], [0], [0], [1], [0, 0, 1, 1], [], []>} : vector<8x8xbf16>, vector<8x4xbf16>, vector<8x4xf32> -> vector<8x4xf32>
    %128 = arith.truncf %127 : vector<8x4xf32> to vector<8x4xbf16>
    %129 = vector.extract_strided_slice %7 {offsets = [0, 24], sizes = [8, 4], strides = [1, 1]} : vector<8x48xbf16> to vector<8x4xbf16>
    %130 = vector.extract_strided_slice %13 {offsets = [0, 24], sizes = [8, 4], strides = [1, 1]} : vector<8x48xbf16> to vector<8x4xbf16>
    %131 = vector.extract_strided_slice %19 {offsets = [0, 24], sizes = [8, 4], strides = [1, 1]} : vector<8x48xbf16> to vector<8x4xbf16>
    %cst_42 = arith.constant dense<0.000000e+00> : vector<8x8xf32>
    %132 = tpu.matmul %129, %130, %cst_42 {dimension_numbers = #tpu.dot_dimension_numbers<[1], [1], [0], [0], [0, 0, 1, 0], [], []>} : vector<8x4xbf16>, vector<8x4xbf16>, vector<8x8xf32> -> vector<8x8xf32>
    %133 = arith.addf %132, %20 : vector<8x8xf32>
    %cst_43 = arith.constant dense<0xFF800000> : vector<8xf32>
    %134 = vector.multi_reduction <maximumf>, %133, %cst_43 [1] : vector<8x8xf32> to vector<8xf32>
    %135 = vector.shape_cast %134 : vector<8xf32> to vector<8x1xf32>
    %136 = vector.broadcast %135 : vector<8x1xf32> to vector<8x8xf32>
    %137 = arith.subf %133, %136 : vector<8x8xf32>
    %138 = math.exp %137 : vector<8x8xf32>
    %cst_44 = arith.constant dense<0.000000e+00> : vector<8xf32>
    %139 = vector.multi_reduction <add>, %138, %cst_44 [1] : vector<8x8xf32> to vector<8xf32>
    %140 = vector.shape_cast %139 : vector<8xf32> to vector<8x1xf32>
    %141 = tpu.reciprocal %140 {approx = true} : vector<8x1xf32> -> vector<8x1xf32>
    %142 = vector.broadcast %141 : vector<8x1xf32> to vector<8x8xf32>
    %143 = arith.mulf %138, %142 : vector<8x8xf32>
    %144 = arith.truncf %143 : vector<8x8xf32> to vector<8x8xbf16>
    %cst_45 = arith.constant dense<0.000000e+00> : vector<8x4xf32>
    %145 = tpu.matmul %144, %131, %cst_45 {dimension_numbers = #tpu.dot_dimension_numbers<[1], [0], [0], [1], [0, 0, 1, 1], [], []>} : vector<8x8xbf16>, vector<8x4xbf16>, vector<8x4xf32> -> vector<8x4xf32>
    %146 = arith.truncf %145 : vector<8x4xf32> to vector<8x4xbf16>
    %147 = vector.extract_strided_slice %7 {offsets = [0, 28], sizes = [8, 4], strides = [1, 1]} : vector<8x48xbf16> to vector<8x4xbf16>
    %148 = vector.extract_strided_slice %13 {offsets = [0, 28], sizes = [8, 4], strides = [1, 1]} : vector<8x48xbf16> to vector<8x4xbf16>
    %149 = vector.extract_strided_slice %19 {offsets = [0, 28], sizes = [8, 4], strides = [1, 1]} : vector<8x48xbf16> to vector<8x4xbf16>
    %cst_46 = arith.constant dense<0.000000e+00> : vector<8x8xf32>
    %150 = tpu.matmul %147, %148, %cst_46 {dimension_numbers = #tpu.dot_dimension_numbers<[1], [1], [0], [0], [0, 0, 1, 0], [], []>} : vector<8x4xbf16>, vector<8x4xbf16>, vector<8x8xf32> -> vector<8x8xf32>
    %151 = arith.addf %150, %20 : vector<8x8xf32>
    %cst_47 = arith.constant dense<0xFF800000> : vector<8xf32>
    %152 = vector.multi_reduction <maximumf>, %151, %cst_47 [1] : vector<8x8xf32> to vector<8xf32>
    %153 = vector.shape_cast %152 : vector<8xf32> to vector<8x1xf32>
    %154 = vector.broadcast %153 : vector<8x1xf32> to vector<8x8xf32>
    %155 = arith.subf %151, %154 : vector<8x8xf32>
    %156 = math.exp %155 : vector<8x8xf32>
    %cst_48 = arith.constant dense<0.000000e+00> : vector<8xf32>
    %157 = vector.multi_reduction <add>, %156, %cst_48 [1] : vector<8x8xf32> to vector<8xf32>
    %158 = vector.shape_cast %157 : vector<8xf32> to vector<8x1xf32>
    %159 = tpu.reciprocal %158 {approx = true} : vector<8x1xf32> -> vector<8x1xf32>
    %160 = vector.broadcast %159 : vector<8x1xf32> to vector<8x8xf32>
    %161 = arith.mulf %156, %160 : vector<8x8xf32>
    %162 = arith.truncf %161 : vector<8x8xf32> to vector<8x8xbf16>
    %cst_49 = arith.constant dense<0.000000e+00> : vector<8x4xf32>
    %163 = tpu.matmul %162, %149, %cst_49 {dimension_numbers = #tpu.dot_dimension_numbers<[1], [0], [0], [1], [0, 0, 1, 1], [], []>} : vector<8x8xbf16>, vector<8x4xbf16>, vector<8x4xf32> -> vector<8x4xf32>
    %164 = arith.truncf %163 : vector<8x4xf32> to vector<8x4xbf16>
    %165 = vector.extract_strided_slice %7 {offsets = [0, 32], sizes = [8, 4], strides = [1, 1]} : vector<8x48xbf16> to vector<8x4xbf16>
    %166 = vector.extract_strided_slice %13 {offsets = [0, 32], sizes = [8, 4], strides = [1, 1]} : vector<8x48xbf16> to vector<8x4xbf16>
    %167 = vector.extract_strided_slice %19 {offsets = [0, 32], sizes = [8, 4], strides = [1, 1]} : vector<8x48xbf16> to vector<8x4xbf16>
    %cst_50 = arith.constant dense<0.000000e+00> : vector<8x8xf32>
    %168 = tpu.matmul %165, %166, %cst_50 {dimension_numbers = #tpu.dot_dimension_numbers<[1], [1], [0], [0], [0, 0, 1, 0], [], []>} : vector<8x4xbf16>, vector<8x4xbf16>, vector<8x8xf32> -> vector<8x8xf32>
    %169 = arith.addf %168, %20 : vector<8x8xf32>
    %cst_51 = arith.constant dense<0xFF800000> : vector<8xf32>
    %170 = vector.multi_reduction <maximumf>, %169, %cst_51 [1] : vector<8x8xf32> to vector<8xf32>
    %171 = vector.shape_cast %170 : vector<8xf32> to vector<8x1xf32>
    %172 = vector.broadcast %171 : vector<8x1xf32> to vector<8x8xf32>
    %173 = arith.subf %169, %172 : vector<8x8xf32>
    %174 = math.exp %173 : vector<8x8xf32>
    %cst_52 = arith.constant dense<0.000000e+00> : vector<8xf32>
    %175 = vector.multi_reduction <add>, %174, %cst_52 [1] : vector<8x8xf32> to vector<8xf32>
    %176 = vector.shape_cast %175 : vector<8xf32> to vector<8x1xf32>
    %177 = tpu.reciprocal %176 {approx = true} : vector<8x1xf32> -> vector<8x1xf32>
    %178 = vector.broadcast %177 : vector<8x1xf32> to vector<8x8xf32>
    %179 = arith.mulf %174, %178 : vector<8x8xf32>
    %180 = arith.truncf %179 : vector<8x8xf32> to vector<8x8xbf16>
    %cst_53 = arith.constant dense<0.000000e+00> : vector<8x4xf32>
    %181 = tpu.matmul %180, %167, %cst_53 {dimension_numbers = #tpu.dot_dimension_numbers<[1], [0], [0], [1], [0, 0, 1, 1], [], []>} : vector<8x8xbf16>, vector<8x4xbf16>, vector<8x4xf32> -> vector<8x4xf32>
    %182 = arith.truncf %181 : vector<8x4xf32> to vector<8x4xbf16>
    %183 = vector.extract_strided_slice %7 {offsets = [0, 36], sizes = [8, 4], strides = [1, 1]} : vector<8x48xbf16> to vector<8x4xbf16>
    %184 = vector.extract_strided_slice %13 {offsets = [0, 36], sizes = [8, 4], strides = [1, 1]} : vector<8x48xbf16> to vector<8x4xbf16>
    %185 = vector.extract_strided_slice %19 {offsets = [0, 36], sizes = [8, 4], strides = [1, 1]} : vector<8x48xbf16> to vector<8x4xbf16>
    %cst_54 = arith.constant dense<0.000000e+00> : vector<8x8xf32>
    %186 = tpu.matmul %183, %184, %cst_54 {dimension_numbers = #tpu.dot_dimension_numbers<[1], [1], [0], [0], [0, 0, 1, 0], [], []>} : vector<8x4xbf16>, vector<8x4xbf16>, vector<8x8xf32> -> vector<8x8xf32>
    %187 = arith.addf %186, %20 : vector<8x8xf32>
    %cst_55 = arith.constant dense<0xFF800000> : vector<8xf32>
    %188 = vector.multi_reduction <maximumf>, %187, %cst_55 [1] : vector<8x8xf32> to vector<8xf32>
    %189 = vector.shape_cast %188 : vector<8xf32> to vector<8x1xf32>
    %190 = vector.broadcast %189 : vector<8x1xf32> to vector<8x8xf32>
    %191 = arith.subf %187, %190 : vector<8x8xf32>
    %192 = math.exp %191 : vector<8x8xf32>
    %cst_56 = arith.constant dense<0.000000e+00> : vector<8xf32>
    %193 = vector.multi_reduction <add>, %192, %cst_56 [1] : vector<8x8xf32> to vector<8xf32>
    %194 = vector.shape_cast %193 : vector<8xf32> to vector<8x1xf32>
    %195 = tpu.reciprocal %194 {approx = true} : vector<8x1xf32> -> vector<8x1xf32>
    %196 = vector.broadcast %195 : vector<8x1xf32> to vector<8x8xf32>
    %197 = arith.mulf %192, %196 : vector<8x8xf32>
    %198 = arith.truncf %197 : vector<8x8xf32> to vector<8x8xbf16>
    %cst_57 = arith.constant dense<0.000000e+00> : vector<8x4xf32>
    %199 = tpu.matmul %198, %185, %cst_57 {dimension_numbers = #tpu.dot_dimension_numbers<[1], [0], [0], [1], [0, 0, 1, 1], [], []>} : vector<8x8xbf16>, vector<8x4xbf16>, vector<8x4xf32> -> vector<8x4xf32>
    %200 = arith.truncf %199 : vector<8x4xf32> to vector<8x4xbf16>
    %201 = vector.extract_strided_slice %7 {offsets = [0, 40], sizes = [8, 4], strides = [1, 1]} : vector<8x48xbf16> to vector<8x4xbf16>
    %202 = vector.extract_strided_slice %13 {offsets = [0, 40], sizes = [8, 4], strides = [1, 1]} : vector<8x48xbf16> to vector<8x4xbf16>
    %203 = vector.extract_strided_slice %19 {offsets = [0, 40], sizes = [8, 4], strides = [1, 1]} : vector<8x48xbf16> to vector<8x4xbf16>
    %cst_58 = arith.constant dense<0.000000e+00> : vector<8x8xf32>
    %204 = tpu.matmul %201, %202, %cst_58 {dimension_numbers = #tpu.dot_dimension_numbers<[1], [1], [0], [0], [0, 0, 1, 0], [], []>} : vector<8x4xbf16>, vector<8x4xbf16>, vector<8x8xf32> -> vector<8x8xf32>
    %205 = arith.addf %204, %20 : vector<8x8xf32>
    %cst_59 = arith.constant dense<0xFF800000> : vector<8xf32>
    %206 = vector.multi_reduction <maximumf>, %205, %cst_59 [1] : vector<8x8xf32> to vector<8xf32>
    %207 = vector.shape_cast %206 : vector<8xf32> to vector<8x1xf32>
    %208 = vector.broadcast %207 : vector<8x1xf32> to vector<8x8xf32>
    %209 = arith.subf %205, %208 : vector<8x8xf32>
    %210 = math.exp %209 : vector<8x8xf32>
    %cst_60 = arith.constant dense<0.000000e+00> : vector<8xf32>
    %211 = vector.multi_reduction <add>, %210, %cst_60 [1] : vector<8x8xf32> to vector<8xf32>
    %212 = vector.shape_cast %211 : vector<8xf32> to vector<8x1xf32>
    %213 = tpu.reciprocal %212 {approx = true} : vector<8x1xf32> -> vector<8x1xf32>
    %214 = vector.broadcast %213 : vector<8x1xf32> to vector<8x8xf32>
    %215 = arith.mulf %210, %214 : vector<8x8xf32>
    %216 = arith.truncf %215 : vector<8x8xf32> to vector<8x8xbf16>
    %cst_61 = arith.constant dense<0.000000e+00> : vector<8x4xf32>
    %217 = tpu.matmul %216, %203, %cst_61 {dimension_numbers = #tpu.dot_dimension_numbers<[1], [0], [0], [1], [0, 0, 1, 1], [], []>} : vector<8x8xbf16>, vector<8x4xbf16>, vector<8x4xf32> -> vector<8x4xf32>
    %218 = arith.truncf %217 : vector<8x4xf32> to vector<8x4xbf16>
    %219 = vector.extract_strided_slice %7 {offsets = [0, 44], sizes = [8, 4], strides = [1, 1]} : vector<8x48xbf16> to vector<8x4xbf16>
    %220 = vector.extract_strided_slice %13 {offsets = [0, 44], sizes = [8, 4], strides = [1, 1]} : vector<8x48xbf16> to vector<8x4xbf16>
    %221 = vector.extract_strided_slice %19 {offsets = [0, 44], sizes = [8, 4], strides = [1, 1]} : vector<8x48xbf16> to vector<8x4xbf16>
    %cst_62 = arith.constant dense<0.000000e+00> : vector<8x8xf32>
    %222 = tpu.matmul %219, %220, %cst_62 {dimension_numbers = #tpu.dot_dimension_numbers<[1], [1], [0], [0], [0, 0, 1, 0], [], []>} : vector<8x4xbf16>, vector<8x4xbf16>, vector<8x8xf32> -> vector<8x8xf32>
    %223 = arith.addf %222, %20 : vector<8x8xf32>
    %cst_63 = arith.constant dense<0xFF800000> : vector<8xf32>
    %224 = vector.multi_reduction <maximumf>, %223, %cst_63 [1] : vector<8x8xf32> to vector<8xf32>
    %225 = vector.shape_cast %224 : vector<8xf32> to vector<8x1xf32>
    %226 = vector.broadcast %225 : vector<8x1xf32> to vector<8x8xf32>
    %227 = arith.subf %223, %226 : vector<8x8xf32>
    %228 = math.exp %227 : vector<8x8xf32>
    %cst_64 = arith.constant dense<0.000000e+00> : vector<8xf32>
    %229 = vector.multi_reduction <add>, %228, %cst_64 [1] : vector<8x8xf32> to vector<8xf32>
    %230 = vector.shape_cast %229 : vector<8xf32> to vector<8x1xf32>
    %231 = tpu.reciprocal %230 {approx = true} : vector<8x1xf32> -> vector<8x1xf32>
    %232 = vector.broadcast %231 : vector<8x1xf32> to vector<8x8xf32>
    %233 = arith.mulf %228, %232 : vector<8x8xf32>
    %234 = arith.truncf %233 : vector<8x8xf32> to vector<8x8xbf16>
    %cst_65 = arith.constant dense<0.000000e+00> : vector<8x4xf32>
    %235 = tpu.matmul %234, %221, %cst_65 {dimension_numbers = #tpu.dot_dimension_numbers<[1], [0], [0], [1], [0, 0, 1, 1], [], []>} : vector<8x8xbf16>, vector<8x4xbf16>, vector<8x4xf32> -> vector<8x4xf32>
    %236 = arith.truncf %235 : vector<8x4xf32> to vector<8x4xbf16>
    %237 = tpu.concatenate %38, %56, %74, %92, %110, %128, %146, %164, %182, %200, %218, %236 in 1 : vector<8x4xbf16>, vector<8x4xbf16>, vector<8x4xbf16>, vector<8x4xbf16>, vector<8x4xbf16>, vector<8x4xbf16>, vector<8x4xbf16>, vector<8x4xbf16>, vector<8x4xbf16>, vector<8x4xbf16>, vector<8x4xbf16>, vector<8x4xbf16> -> vector<8x48xbf16>
    %c0_66 = arith.constant 0 : index
    %c0_67 = arith.constant 0 : index
    %238 = vector.load %arg8[%c0_66, %c0_67] : memref<48x48xbf16, #tpu.memory_space<vmem>>, vector<48x48xbf16>
    %cst_68 = arith.constant dense<0.000000e+00> : vector<8x48xf32>
    %239 = tpu.matmul %237, %238, %cst_68 {dimension_numbers = #tpu.dot_dimension_numbers<[1], [0], [0], [1], [0, 0, 1, 1], [], []>} : vector<8x48xbf16>, vector<48x48xbf16>, vector<8x48xf32> -> vector<8x48xf32>
    %c0_69 = arith.constant 0 : index
    %c0_70 = arith.constant 0 : index
    %240 = vector.load %arg9[%c0_69, %c0_70] : memref<1x48xf32, #tpu.memory_space<vmem>>, vector<1x48xf32>
    %241 = vector.broadcast %240 : vector<1x48xf32> to vector<8x48xf32>
    %242 = arith.addf %239, %241 : vector<8x48xf32>
    %c0_71 = arith.constant 0 : index
    %c0_72 = arith.constant 0 : index
    %c0_73 = arith.constant 0 : index
    %243 = vector.load %arg11[%c0_71, %c0_72, %c0_73] : memref<1x8x48xf32, #tpu.memory_space<vmem>>, vector<1x8x48xf32>
    %244 = vector.shape_cast %243 : vector<1x8x48xf32> to vector<8x48xf32>
    %245 = vector.shape_cast %242 : vector<8x48xf32> to vector<1x8x48xf32>
    tpu.vector_store %arg11[%c0_71, %c0_72, %c0_73], %245 {strides = array<i32>} : memref<1x8x48xf32, #tpu.memory_space<vmem>>, vector<1x8x48xf32>,
    return
  }
  func.func @transform_0(%arg0: i32) -> (i32, i32, i32) {
    %c0_i32 = arith.constant 0 : i32
    %c0_i32_0 = arith.constant 0 : i32
    %c0_i32_1 = arith.constant 0 : i32
    return %arg0, %c0_i32, %c0_i32_0 : i32, i32, i32
  }
  func.func @transform_1(%arg0: i32) -> (i32, i32) {
    %c0_i32 = arith.constant 0 : i32
    %c0_i32_0 = arith.constant 0 : i32
    %c0_i32_1 = arith.constant 0 : i32
    return %c0_i32, %c0_i32_0 : i32, i32
  }
  func.func @transform_2(%arg0: i32) -> (i32, i32) {
    %c0_i32 = arith.constant 0 : i32
    %c0_i32_0 = arith.constant 0 : i32
    %c0_i32_1 = arith.constant 0 : i32
    return %c0_i32, %c0_i32_0 : i32, i32
  }
  func.func @transform_3(%arg0: i32) -> (i32, i32) {
    %c0_i32 = arith.constant 0 : i32
    %c0_i32_0 = arith.constant 0 : i32
    %c0_i32_1 = arith.constant 0 : i32
    return %c0_i32, %c0_i32_0 : i32, i32
  }
  func.func @transform_4(%arg0: i32) -> (i32, i32) {
    %c0_i32 = arith.constant 0 : i32
    %c0_i32_0 = arith.constant 0 : i32
    %c0_i32_1 = arith.constant 0 : i32
    return %c0_i32, %c0_i32_0 : i32, i32
  }
  func.func @transform_5(%arg0: i32) -> (i32, i32) {
    %c0_i32 = arith.constant 0 : i32
    %c0_i32_0 = arith.constant 0 : i32
    %c0_i32_1 = arith.constant 0 : i32
    return %c0_i32, %c0_i32_0 : i32, i32
  }
  func.func @transform_6(%arg0: i32) -> (i32, i32) {
    %c0_i32 = arith.constant 0 : i32
    %c0_i32_0 = arith.constant 0 : i32
    %c0_i32_1 = arith.constant 0 : i32
    return %c0_i32, %c0_i32_0 : i32, i32
  }
  func.func @transform_7(%arg0: i32) -> (i32, i32) {
    %c0_i32 = arith.constant 0 : i32
    %c0_i32_0 = arith.constant 0 : i32
    %c0_i32_1 = arith.constant 0 : i32
    return %c0_i32, %c0_i32_0 : i32, i32
  }
  func.func @transform_8(%arg0: i32) -> (i32, i32) {
    %c0_i32 = arith.constant 0 : i32
    %c0_i32_0 = arith.constant 0 : i32
    %c0_i32_1 = arith.constant 0 : i32
    return %c0_i32, %c0_i32_0 : i32, i32
  }
  func.func @transform_9(%arg0: i32) -> (i32, i32) {
    %c0_i32 = arith.constant 0 : i32
    %c0_i32_0 = arith.constant 0 : i32
    %c0_i32_1 = arith.constant 0 : i32
    return %c0_i32, %c0_i32_0 : i32, i32
  }
  func.func @transform_10(%arg0: i32) -> (i32, i32, i32) {
    %c0_i32 = arith.constant 0 : i32
    %c0_i32_0 = arith.constant 0 : i32
    %c0_i32_1 = arith.constant 0 : i32
    return %arg0, %c0_i32, %c0_i32_0 : i32, i32, i32
  }
}

</mosaic_0001>

<llo_original>
// kernel: tpu_custom_call.1
$region0: #{tpu_custom_call.1}
  #allocation0 [shape = 'u32[]', space=smem, size = 0x4, offset = 0x4, fixed_abs, tag = 'smem constant byte address 0x4 - core index']
  #allocation1 [shape = 'u32[144,128]{1,0:T(1,128)}', space=vmem, size = 0x12000, scoped, tag = 'internal scratch']
  %s0 = inlined_call_operand.hbm [shape: bf16[2,8,48], index: 0, kind: input, shape index: {}]
  %s1 = inlined_call_operand.hbm [shape: bf16[48,48], index: 1, kind: input, shape index: {}]
  %s2 = inlined_call_operand.hbm [shape: bf16[48,48], index: 2, kind: input, shape index: {}]
  %s3 = inlined_call_operand.hbm [shape: bf16[48,48], index: 3, kind: input, shape index: {}]
  %s4 = inlined_call_operand.vmem [shape: f32[1,48], index: 4, kind: input, shape index: {}]
  %s5 = inlined_call_operand.vmem [shape: f32[1,48], index: 5, kind: input, shape index: {}]
  %s6 = inlined_call_operand.hbm [shape: f32[1,48], index: 6, kind: input, shape index: {}]
  %s7 = inlined_call_operand.vmem [shape: bf16[48,48], index: 7, kind: input, shape index: {}]
  %s8 = inlined_call_operand.hbm [shape: f32[1,48], index: 8, kind: input, shape index: {}]
  %s9 = inlined_call_operand.vmem [shape: f32[8,8], index: 9, kind: input, shape index: {}]
  %s10 = inlined_call_operand.hbm [shape: f32[2,8,48], index: 10, kind: output, shape index: {}]
  %s11 = sld [smem:[#allocation0]]
  $region97: #{tpu_custom_call.1} parent=0
    _
  %s13 = ssub.s32 1, %s11
  %s14 = scalar_select 0, %s13, %s11
  $region1: #{tpu_custom_call.1} parent=0
    #allocation2 [shape = 'u8[4096]{0}', space=vmem, size = 0x1000, scoped, tag = 'input window, operand 0']
    #allocation3 [shape = 's32[2]{0}', space=sflag, size = 0x8, scoped, tag = 'scoped memory for tpu_custom_call.1']
    #allocation4 [shape = 's32[2]{0}', space=sflag, size = 0x8, scoped, tag = 'scoped memory for tpu_custom_call.1']
    #allocation5 [shape = 'u8[12288]{0}', space=vmem, size = 0x3000, scoped, tag = 'input window, operand 1, single buffered']
    #allocation6 [shape = 's32[1]{0}', space=sflag, size = 0x4, scoped, tag = 'scoped memory for tpu_custom_call.1']
    #allocation7 [shape = 'u8[12288]{0}', space=vmem, size = 0x3000, scoped, tag = 'input window, operand 2, single buffered']
    #allocation8 [shape = 'u8[12288]{0}', space=vmem, size = 0x3000, scoped, tag = 'input window, operand 3, single buffered']
    #allocation9 [shape = 's32[1]{0}', space=sflag, size = 0x4, scoped, tag = 'scoped memory for tpu_custom_call.1']
    #allocation10 [shape = 'u8[512]{0}', space=vmem, size = 0x400, scoped, tag = 'input window, operand 6, single buffered']
    #allocation11 [shape = 'u8[512]{0}', space=vmem, size = 0x400, scoped, tag = 'input window, operand 8, single buffered']
    #allocation12 [shape = 's32[1]{0}', space=sflag, size = 0x4, scoped, tag = 'scoped memory for tpu_custom_call.1']
    #allocation13 [shape = 'u8[8192]{0}', space=vmem, size = 0x2000, scoped, tag = 'output window, operand 0']
    %15 = vsyncpa [#allocation3], 0
    %s16 = scalar_lea.sflag [#allocation3], 1
    %17 = vsyncpa %s16, 0
    %18 = vsyncpa [#allocation6], 0
    %19 = vsyncpa [#allocation9], 0
    %20 = vsyncpa [#allocation12], 0
    %21 = vsyncpa [#allocation4], 0
    %s22 = scalar_lea.sflag [#allocation4], 1
    %23 = vsyncpa %s22, 0
    loop: start=0, step=1, limit=4
    $region2: #{tpu_custom_call.1} parent=1 // loop_pre_header
      _
    $region3: #{tpu_custom_call.1} parent=1 // loop_header
      %s25 = sphi 0, %s29
      %p26 = scmp.ge.s32.totalorder %s25, 4
      %s35 = sphi 0, %s37
      %s38 = sphi 0, %s35
      %s39 = sphi 0, %s38
      %s55 = sphi 0, %s39
      %s59 = sphi 0, %s59
      %s61 = sphi 0, %s59
      %s62 = sphi 0, %s61
      %s76 = sphi 0, %s62
      %s80 = sphi 0, %s80
      %s82 = sphi 0, %s80
      %s83 = sphi 0, %s82
      %s97 = sphi 0, %s83
      %s101 = sphi 0, %s101
      %s103 = sphi 0, %s101
      %s104 = sphi 0, %s103
      %s118 = sphi 0, %s104
      %s122 = sphi 0, %s122
      %s124 = sphi 0, %s122
      %s125 = sphi 0, %s124
      %s139 = sphi 0, %s125
      %s143 = sphi 0, %s143
      %s145 = sphi 0, %s143
      %s146 = sphi 0, %s145
      %s160 = sphi 0, %s146
      %s164 = sphi 0, %s164
      %s166 = sphi 0, %s164
      %s167 = sphi 0, %s166
      %s181 = sphi 0, %s167
      %s185 = sphi 0, %s185
      %s187 = sphi 0, %s185
      %s188 = sphi 0, %s187
      %s202 = sphi 0, %s188
      %s206 = sphi 0, %s206
      %s208 = sphi 0, %s206
      %s209 = sphi 0, %s208
      %s223 = sphi 0, %s209
      %s227 = sphi 0, %s227
      %s229 = sphi 0, %s227
      %s230 = sphi 0, %s229
      %s244 = sphi 0, %s230
      %s250 = sphi 0, %s252
      %s253 = sphi 0, %s250
      %s254 = sphi 0, %s253
      %s270 = sphi 0, %s254
    $region4: #{tpu_custom_call.1} parent=1 // loop_header_branch
      %28 = sbr.rel (%p26) target = $region8
    $region5: #{tpu_custom_call.1} parent=1 // loop_body
      %s30 = ssub.s32 %s25, 1
      %s31 = ssub.s32 %s25, 2
      %s32 = sadd.s32 %s25, 1
      %s33 = ssub.s32 %s25, %s32
      %p34 = scmp.eq.s32.totalorder %s33, 0
      %s36 = sadd.s32 %s35, 1
      %s37 = scalar_select %p34, %s35, %s36
      %p40 = pneg %p34
      %p41 = scmp.eq.s32.totalorder %s25, 1
      %p42 = por %p40, %p41
      %p43 = scmp.ne.s32.totalorder %s35, %s38
      %p44 = scmp.eq.s32.totalorder %s25, 0
      %p45 = por %p43, %p44
      %p46 = scmp.ne.s32.totalorder %s35, %s38
      %p47 = scmp.eq.s32.totalorder %s30, 1
      %p48 = por %p46, %p47
      %p49 = scmp.ne.s32.totalorder %s38, %s39
      %p50 = scmp.eq.s32.totalorder %s30, 0
      %p51 = por %p49, %p50
      %p52 = scmp.ne.s32.totalorder %s38, %s39
      %p53 = scmp.eq.s32.totalorder %s31, 1
      %p54 = por %p52, %p53
      %p56 = scmp.ne.s32.totalorder %s39, %s55
      %p57 = scmp.eq.s32.totalorder %s31, 0
      %p58 = por %p56, %p57
      %s60 = sadd.s32 %s59, 1
      %p63 = scmp.eq.s32.totalorder %s25, 1
      %p64 = scmp.ne.s32.totalorder %s59, %s61
      %p65 = scmp.eq.s32.totalorder %s25, 0
      %p66 = por %p64, %p65
      %p67 = scmp.ne.s32.totalorder %s59, %s61
      %p68 = scmp.eq.s32.totalorder %s30, 1
      %p69 = por %p67, %p68
      %p70 = scmp.ne.s32.totalorder %s61, %s62
      %p71 = scmp.eq.s32.totalorder %s30, 0
      %p72 = por %p70, %p71
      %p73 = scmp.ne.s32.totalorder %s61, %s62
      %p74 = scmp.eq.s32.totalorder %s31, 1
      %p75 = por %p73, %p74
      %p77 = scmp.ne.s32.totalorder %s62, %s76
      %p78 = scmp.eq.s32.totalorder %s31, 0
      %p79 = por %p77, %p78
      %s81 = sadd.s32 %s80, 1
      %p84 = scmp.eq.s32.totalorder %s25, 1
      %p85 = scmp.ne.s32.totalorder %s80, %s82
      %p86 = scmp.eq.s32.totalorder %s25, 0
      %p87 = por %p85, %p86
      %p88 = scmp.ne.s32.totalorder %s80, %s82
      %p89 = scmp.eq.s32.totalorder %s30, 1
      %p90 = por %p88, %p89
      %p91 = scmp.ne.s32.totalorder %s82, %s83
      %p92 = scmp.eq.s32.totalorder %s30, 0
      %p93 = por %p91, %p92
      %p94 = scmp.ne.s32.totalorder %s82, %s83
      %p95 = scmp.eq.s32.totalorder %s31, 1
      %p96 = por %p94, %p95
      %p98 = scmp.ne.s32.totalorder %s83, %s97
      %p99 = scmp.eq.s32.totalorder %s31, 0
      %p100 = por %p98, %p99
      %s102 = sadd.s32 %s101, 1
      %p105 = scmp.eq.s32.totalorder %s25, 1
      %p106 = scmp.ne.s32.totalorder %s101, %s103
      %p107 = scmp.eq.s32.totalorder %s25, 0
      %p108 = por %p106, %p107
      %p109 = scmp.ne.s32.totalorder %s101, %s103
      %p110 = scmp.eq.s32.totalorder %s30, 1
      %p111 = por %p109, %p110
      %p112 = scmp.ne.s32.totalorder %s103, %s104
      %p113 = scmp.eq.s32.totalorder %s30, 0
      %p114 = por %p112, %p113
      %p115 = scmp.ne.s32.totalorder %s103, %s104
      %p116 = scmp.eq.s32.totalorder %s31, 1
      %p117 = por %p115, %p116
      %p119 = scmp.ne.s32.totalorder %s104, %s118
      %p120 = scmp.eq.s32.totalorder %s31, 0
      %p121 = por %p119, %p120
      %s123 = sadd.s32 %s122, 1
      %p126 = scmp.eq.s32.totalorder %s25, 1
      %p127 = scmp.ne.s32.totalorder %s122, %s124
      %p128 = scmp.eq.s32.totalorder %s25, 0
      %p129 = por %p127, %p128
      %p130 = scmp.ne.s32.totalorder %s122, %s124
      %p131 = scmp.eq.s32.totalorder %s30, 1
      %p132 = por %p130, %p131
      %p133 = scmp.ne.s32.totalorder %s124, %s125
      %p134 = scmp.eq.s32.totalorder %s30, 0
      %p135 = por %p133, %p134
      %p136 = scmp.ne.s32.totalorder %s124, %s125
      %p137 = scmp.eq.s32.totalorder %s31, 1
      %p138 = por %p136, %p137
      %p140 = scmp.ne.s32.totalorder %s125, %s139
      %p141 = scmp.eq.s32.totalorder %s31, 0
      %p142 = por %p140, %p141
      %s144 = sadd.s32 %s143, 1
      %p147 = scmp.eq.s32.totalorder %s25, 1
      %p148 = scmp.ne.s32.totalorder %s143, %s145
      %p149 = scmp.eq.s32.totalorder %s25, 0
      %p150 = por %p148, %p149
      %p151 = scmp.ne.s32.totalorder %s143, %s145
      %p152 = scmp.eq.s32.totalorder %s30, 1
      %p153 = por %p151, %p152
      %p154 = scmp.ne.s32.totalorder %s145, %s146
      %p155 = scmp.eq.s32.totalorder %s30, 0
      %p156 = por %p154, %p155
      %p157 = scmp.ne.s32.totalorder %s145, %s146
      %p158 = scmp.eq.s32.totalorder %s31, 1
      %p159 = por %p157, %p158
      %p161 = scmp.ne.s32.totalorder %s146, %s160
      %p162 = scmp.eq.s32.totalorder %s31, 0
      %p163 = por %p161, %p162
      %s165 = sadd.s32 %s164, 1
      %p168 = scmp.eq.s32.totalorder %s25, 1
      %p169 = scmp.ne.s32.totalorder %s164, %s166
      %p170 = scmp.eq.s32.totalorder %s25, 0
      %p171 = por %p169, %p170
      %p172 = scmp.ne.s32.totalorder %s164, %s166
      %p173 = scmp.eq.s32.totalorder %s30, 1
      %p174 = por %p172, %p173
      %p175 = scmp.ne.s32.totalorder %s166, %s167
      %p176 = scmp.eq.s32.totalorder %s30, 0
      %p177 = por %p175, %p176
      %p178 = scmp.ne.s32.totalorder %s166, %s167
      %p179 = scmp.eq.s32.totalorder %s31, 1
      %p180 = por %p178, %p179
      %p182 = scmp.ne.s32.totalorder %s167, %s181
      %p183 = scmp.eq.s32.totalorder %s31, 0
      %p184 = por %p182, %p183
      %s186 = sadd.s32 %s185, 1
      %p189 = scmp.eq.s32.totalorder %s25, 1
      %p190 = scmp.ne.s32.totalorder %s185, %s187
      %p191 = scmp.eq.s32.totalorder %s25, 0
      %p192 = por %p190, %p191
      %p193 = scmp.ne.s32.totalorder %s185, %s187
      %p194 = scmp.eq.s32.totalorder %s30, 1
      %p195 = por %p193, %p194
      %p196 = scmp.ne.s32.totalorder %s187, %s188
      %p197 = scmp.eq.s32.totalorder %s30, 0
      %p198 = por %p196, %p197
      %p199 = scmp.ne.s32.totalorder %s187, %s188
      %p200 = scmp.eq.s32.totalorder %s31, 1
      %p201 = por %p199, %p200
      %p203 = scmp.ne.s32.totalorder %s188, %s202
      %p204 = scmp.eq.s32.totalorder %s31, 0
      %p205 = por %p203, %p204
      %s207 = sadd.s32 %s206, 1
      %p210 = scmp.eq.s32.totalorder %s25, 1
      %p211 = scmp.ne.s32.totalorder %s206, %s208
      %p212 = scmp.eq.s32.totalorder %s25, 0
      %p213 = por %p211, %p212
      %p214 = scmp.ne.s32.totalorder %s206, %s208
      %p215 = scmp.eq.s32.totalorder %s30, 1
      %p216 = por %p214, %p215
      %p217 = scmp.ne.s32.totalorder %s208, %s209
      %p218 = scmp.eq.s32.totalorder %s30, 0
      %p219 = por %p217, %p218
      %p220 = scmp.ne.s32.totalorder %s208, %s209
      %p221 = scmp.eq.s32.totalorder %s31, 1
      %p222 = por %p220, %p221
      %p224 = scmp.ne.s32.totalorder %s209, %s223
      %p225 = scmp.eq.s32.totalorder %s31, 0
      %p226 = por %p224, %p225
      %s228 = sadd.s32 %s227, 1
      %p231 = scmp.eq.s32.totalorder %s25, 1
      %p232 = scmp.ne.s32.totalorder %s227, %s229
      %p233 = scmp.eq.s32.totalorder %s25, 0
      %p234 = por %p232, %p233
      %p235 = scmp.ne.s32.totalorder %s227, %s229
      %p236 = scmp.eq.s32.totalorder %s30, 1
      %p237 = por %p235, %p236
      %p238 = scmp.ne.s32.totalorder %s229, %s230
      %p239 = scmp.eq.s32.totalorder %s30, 0
      %p240 = por %p238, %p239
      %p241 = scmp.ne.s32.totalorder %s229, %s230
      %p242 = scmp.eq.s32.totalorder %s31, 1
      %p243 = por %p241, %p242
      %p245 = scmp.ne.s32.totalorder %s230, %s244
      %p246 = scmp.eq.s32.totalorder %s31, 0
      %p247 = por %p245, %p246
      %s248 = ssub.s32 %s25, %s32
      %p249 = scmp.eq.s32.totalorder %s248, 0
      %s251 = sadd.s32 %s250, 1
      %s252 = scalar_select %p249, %s250, %s251
      %p255 = pneg %p249
      %p256 = scmp.eq.s32.totalorder %s25, 1
      %p257 = por %p255, %p256
      %p258 = scmp.ne.s32.totalorder %s250, %s253
      %p259 = scmp.eq.s32.totalorder %s25, 0
      %p260 = por %p258, %p259
      %p261 = scmp.ne.s32.totalorder %s250, %s253
      %p262 = scmp.eq.s32.totalorder %s30, 1
      %p263 = por %p261, %p262
      %p264 = scmp.ne.s32.totalorder %s253, %s254
      %p265 = scmp.eq.s32.totalorder %s30, 0
      %p266 = por %p264, %p265
      %p267 = scmp.ne.s32.totalorder %s253, %s254
      %p268 = scmp.eq.s32.totalorder %s31, 1
      %p269 = por %p267, %p268
      %p271 = scmp.ne.s32.totalorder %s254, %s270
      %p272 = scmp.eq.s32.totalorder %s31, 0
      %p273 = por %p271, %p272
      %p274 = scmp.le.s32.totalorder 1, %s25
      %p275 = scmp.lt.s32.totalorder %s25, 3
      %p276 = pnand %p274, %p275
      %p277 = pneg %p276
      // Predicated region
      $region9: #{tpu_custom_call.1} parent=5 // pred_check
        _
      $region10: #{tpu_custom_call.1} parent=5 // pred_check_branch
        %279 = sbr.rel (%p276) target = $region12
      $region11: #{tpu_custom_call.1} parent=5 // pred_region
        %s280 = ssub.s32 %s25, 1
        // Predicated region
        $region13: #{tpu_custom_call.1} parent=11 // pred_check
          %p281 = pneg %p72
        $region14: #{tpu_custom_call.1} parent=11 // pred_check_branch
          %283 = sbr.rel (%p281) target = $region16
        $region15: #{tpu_custom_call.1} parent=11 // pred_region
          %s285 = ssub.s32 384, 384
          %286 = vsyncadd [#allocation6], %s285
          %s287 = sshll.u32 [#allocation5], 4
          %s288 = int_to_ptr.vmem [resolvable:$true] %s287
          %293 = dma.hbm_to_vmem [thread:$0]  %s1, 384, %s288, [#allocation6], 64, 64, 4
        $region16: #{tpu_custom_call.1} parent=11 // pred_fallthru
          _
        // Predicated region
        $region17: #{tpu_custom_call.1} parent=11 // pred_check
          %p294 = pneg %p93
        $region18: #{tpu_custom_call.1} parent=11 // pred_check_branch
          %296 = sbr.rel (%p294) target = $region20
        $region19: #{tpu_custom_call.1} parent=11 // pred_region
          %s298 = ssub.s32 384, 384
          %299 = vsyncadd [#allocation6], %s298
          %s300 = sshll.u32 [#allocation7], 4
          %s301 = int_to_ptr.vmem [resolvable:$true] %s300
          %306 = dma.hbm_to_vmem [thread:$0]  %s2, 384, %s301, [#allocation6], 64, 64, 4
        $region20: #{tpu_custom_call.1} parent=11 // pred_fallthru
          _
        // Predicated region
        $region21: #{tpu_custom_call.1} parent=11 // pred_check
          %p307 = pneg %p114
        $region22: #{tpu_custom_call.1} parent=11 // pred_check_branch
          %309 = sbr.rel (%p307) target = $region24
        $region23: #{tpu_custom_call.1} parent=11 // pred_region
          %s311 = ssub.s32 384, 384
          %312 = vsyncadd [#allocation9], %s311
          %s313 = sshll.u32 [#allocation8], 4
          %s314 = int_to_ptr.vmem [resolvable:$true] %s313
          %319 = dma.hbm_to_vmem [thread:$0]  %s3, 384, %s314, [#allocation9], 64, 64, 4
        $region24: #{tpu_custom_call.1} parent=11 // pred_fallthru
          _
        // Predicated region
        $region25: #{tpu_custom_call.1} parent=11 // pred_check
          %p320 = pneg %p135
        $region26: #{tpu_custom_call.1} parent=11 // pred_check_branch
          %322 = sbr.rel (%p320) target = $region28
        $region27: #{tpu_custom_call.1} parent=11 // pred_region
          _
        $region28: #{tpu_custom_call.1} parent=11 // pred_fallthru
          _
        // Predicated region
        $region29: #{tpu_custom_call.1} parent=11 // pred_check
          %p323 = pneg %p156
        $region30: #{tpu_custom_call.1} parent=11 // pred_check_branch
          %325 = sbr.rel (%p323) target = $region32
        $region31: #{tpu_custom_call.1} parent=11 // pred_region
          _
        $region32: #{tpu_custom_call.1} parent=11 // pred_fallthru
          _
        // Predicated region
        $region33: #{tpu_custom_call.1} parent=11 // pred_check
          %p326 = pneg %p177
        $region34: #{tpu_custom_call.1} parent=11 // pred_check_branch
          %328 = sbr.rel (%p326) target = $region36
        $region35: #{tpu_custom_call.1} parent=11 // pred_region
          %s330 = ssub.s32 16, 16
          %331 = vsyncadd [#allocation9], %s330
          %s333 = sshll.u32 [#allocation10], 4
          %s334 = int_to_ptr.vmem [resolvable:$true] %s333
          %336 = dma.hbm_to_vmem [thread:$0]  %s6, 16, %s334, [#allocation9]
        $region36: #{tpu_custom_call.1} parent=11 // pred_fallthru
          _
        // Predicated region
        $region37: #{tpu_custom_call.1} parent=11 // pred_check
          %p337 = pneg %p198
        $region38: #{tpu_custom_call.1} parent=11 // pred_check_branch
          %339 = sbr.rel (%p337) target = $region40
        $region39: #{tpu_custom_call.1} parent=11 // pred_region
          _
        $region40: #{tpu_custom_call.1} parent=11 // pred_fallthru
          _
        // Predicated region
        $region41: #{tpu_custom_call.1} parent=11 // pred_check
          %p340 = pneg %p219
        $region42: #{tpu_custom_call.1} parent=11 // pred_check_branch
          %342 = sbr.rel (%p340) target = $region44
        $region43: #{tpu_custom_call.1} parent=11 // pred_region
          %s344 = ssub.s32 16, 16
          %345 = vsyncadd [#allocation12], %s344
          %s347 = sshll.u32 [#allocation11], 4
          %s348 = int_to_ptr.vmem [resolvable:$true] %s347
          %350 = dma.hbm_to_vmem [thread:$0]  %s8, 16, %s348, [#allocation12]
        $region44: #{tpu_custom_call.1} parent=11 // pred_fallthru
          _
        // Predicated region
        $region45: #{tpu_custom_call.1} parent=11 // pred_check
          %p351 = pneg %p240
        $region46: #{tpu_custom_call.1} parent=11 // pred_check_branch
          %353 = sbr.rel (%p351) target = $region48
        $region47: #{tpu_custom_call.1} parent=11 // pred_region
          _
        $region48: #{tpu_custom_call.1} parent=11 // pred_fallthru
          _
      $region12: #{tpu_custom_call.1} parent=5 // pred_fallthru
        _
      %p354 = scmp.lt.s32.totalorder %s25, 2
      // Predicated region
      $region49: #{tpu_custom_call.1} parent=5 // pred_check
        %p355 = pneg %p354
      $region50: #{tpu_custom_call.1} parent=5 // pred_check_branch
        %357 = sbr.rel (%p355) target = $region52
      $region51: #{tpu_custom_call.1} parent=5 // pred_region
        // Predicated region
        $region53: #{tpu_custom_call.1} parent=51 // pred_check
          %p358 = pneg %p45
        $region54: #{tpu_custom_call.1} parent=51 // pred_check_branch
          %360 = sbr.rel (%p358) target = $region56
        $region55: #{tpu_custom_call.1} parent=51 // pred_region
          %s361 = sand.u32 %s35, 1
          %s362 = scalar_lea.sflag [#allocation3], %s361
          %s363 = sand.u32 %s35, 1
          %s364 = smul.addr %s363, 4
          %s365 = scalar_lea.vmem [#allocation2], %s364
          %s367 = ssub.s32 64, 64
          %368 = vsyncadd %s362, %s367
          %s369 = smul.addr %s25, 64
          %s370 = scalar_lea.hbm %s0, %s369
          %s372 = sshll.u32 %s365, 4
          %s373 = int_to_ptr.vmem [resolvable:$true] %s372
          %375 = dma.hbm_to_vmem [thread:$0]  %s370, 64, %s373, %s362
        $region56: #{tpu_custom_call.1} parent=51 // pred_fallthru
          _
      $region52: #{tpu_custom_call.1} parent=5 // pred_fallthru
        _
      %p376 = scmp.le.s32.totalorder 1, %s25
      %p377 = scmp.lt.s32.totalorder %s25, 3
      %p378 = pnand %p376, %p377
      %p379 = pneg %p378
      // Predicated region
      $region57: #{tpu_custom_call.1} parent=5 // pred_check
        _
      $region58: #{tpu_custom_call.1} parent=5 // pred_check_branch
        %381 = sbr.rel (%p378) target = $region60
      $region59: #{tpu_custom_call.1} parent=5 // pred_region
        %s382 = ssub.s32 %s25, 1
        %s383 = sand.u32 %s38, 1
        %s384 = scalar_lea.sflag [#allocation3], %s383
        %s385 = sand.u32 %s38, 1
        %s386 = smul.addr %s385, 4
        %s387 = scalar_lea.vmem [#allocation2], %s386
        // Predicated region
        $region61: #{tpu_custom_call.1} parent=59 // pred_check
          %p388 = pneg %p51
        $region62: #{tpu_custom_call.1} parent=59 // pred_check_branch
          %390 = sbr.rel (%p388) target = $region64
        $region63: #{tpu_custom_call.1} parent=59 // pred_region
          %391 = dma.done %s384, 64
        $region64: #{tpu_custom_call.1} parent=59 // pred_fallthru
          _
        // Predicated region
        $region65: #{tpu_custom_call.1} parent=59 // pred_check
          %p392 = pneg %p72
        $region66: #{tpu_custom_call.1} parent=59 // pred_check_branch
          %394 = sbr.rel (%p392) target = $region68
        $region67: #{tpu_custom_call.1} parent=59 // pred_region
          %395 = dma.done [#allocation6], 384
        $region68: #{tpu_custom_call.1} parent=59 // pred_fallthru
          _
        // Predicated region
        $region69: #{tpu_custom_call.1} parent=59 // pred_check
          %p396 = pneg %p93
        $region70: #{tpu_custom_call.1} parent=59 // pred_check_branch
          %398 = sbr.rel (%p396) target = $region72
        $region71: #{tpu_custom_call.1} parent=59 // pred_region
          %399 = dma.done [#allocation6], 384
        $region72: #{tpu_custom_call.1} parent=59 // pred_fallthru
          _
        // Predicated region
        $region73: #{tpu_custom_call.1} parent=59 // pred_check
          %p400 = pneg %p114
        $region74: #{tpu_custom_call.1} parent=59 // pred_check_branch
          %402 = sbr.rel (%p400) target = $region76
        $region75: #{tpu_custom_call.1} parent=59 // pred_region
          %403 = dma.done [#allocation9], 384
        $region76: #{tpu_custom_call.1} parent=59 // pred_fallthru
          _
        // Predicated region
        $region77: #{tpu_custom_call.1} parent=59 // pred_check
          %p404 = pneg %p177
        $region78: #{tpu_custom_call.1} parent=59 // pred_check_branch
          %406 = sbr.rel (%p404) target = $region80
        $region79: #{tpu_custom_call.1} parent=59 // pred_region
          %407 = dma.done [#allocation9], 16
        $region80: #{tpu_custom_call.1} parent=59 // pred_fallthru
          _
        // Predicated region
        $region81: #{tpu_custom_call.1} parent=59 // pred_check
          %p408 = pneg %p219
        $region82: #{tpu_custom_call.1} parent=59 // pred_check_branch
          %410 = sbr.rel (%p408) target = $region84
        $region83: #{tpu_custom_call.1} parent=59 // pred_region
          %411 = dma.done [#allocation12], 16
        $region84: #{tpu_custom_call.1} parent=59 // pred_fallthru
          _
        %s412 = sand.u32 %s38, 1
        %s413 = scalar_lea.sflag [#allocation3], %s412
        %s414 = sand.u32 %s38, 1
        %s415 = smul.addr %s414, 4
        %s416 = scalar_lea.vmem [#allocation2], %s415
        %p417 = pneg %p51
        %p418 = pneg %p48
        %p419 = pneg %p72
        %p420 = pneg %p69
        %p421 = pneg %p93
        %p422 = pneg %p90
        %p423 = pneg %p114
        %p424 = pneg %p111
        %p425 = pneg %p135
        %p426 = pneg %p132
        %p427 = pneg %p156
        %p428 = pneg %p153
        %p429 = pneg %p177
        %p430 = pneg %p174
        %p431 = pneg %p198
        %p432 = pneg %p195
        %p433 = pneg %p219
        %p434 = pneg %p216
        %p435 = pneg %p240
        %p436 = pneg %p237
        %p437 = pneg %p266
        %p438 = pneg %p263
        %s439 = sand.u32 %s253, 1
        %s440 = scalar_lea.sflag [#allocation4], %s439
        %s441 = sand.u32 %s253, 1
        %s442 = smul.addr %s441, 8
        %s443 = scalar_lea.vmem [#allocation13], %s442
        %v445 = vld [vmem:[%s387] sm:$0xf]
        %v446 = vld [vmem:[#allocation5] sm:$0xf]
        %v447 = vld [vmem:[#allocation5 + $0x4] sm:$0xf]
        %v448 = vld [vmem:[#allocation5 + $0x8] sm:$0xf]
        %v449 = vld [vmem:[#allocation5 + $0xc] sm:$0xf]
        %v450 = vld [vmem:[#allocation5 + $0x10] sm:$0xf]
        %v451 = vld [vmem:[#allocation5 + $0x14] sm:$0xf]
        %v452 = vld [vmem:[%s4] sm:$0x1]
        %v454 = vlaneseq
        %v455 = vshrl.u32 %v454, 7
        %v456 = vsub.s32 0, %v455
        %v457 = vrot.slane %v452, %v456
        %v465 = vunpack.c.l.b16 %v446
        %v466 = vunpack.c.l.b16 %v447
        %v467 = vunpack.c.l.b16 %v448
        %v468 = vunpack.c.l.b16 %v449
        %v469 = vunpack.c.l.b16 %v450
        %v470 = vunpack.c.l.b16 %v451
        %v471 = vpack.c.b16 %v466, %v465
        %v472 = vpack.c.b16 %v468, %v467
        %v473 = vpack.c.b16 %v470, %v469
        %vm477 = vcmask 392192
        %v479 = vsel %vm477, %v445, 0
        %481 = vmatprep.subr.bf16.mxu0 0
        %482 = vmatpush1.bf16.msra.mxu0 %v471
        %483 = vmatprep.subr.bf16.mxu0 0
        %484 = vmatpush1.bf16.msra.mxu0 %v472
        %485 = vmatprep.subr.bf16.mxu0 0
        %486 = vmatpush1.bf16.msra.mxu0 %v473
        %487 = vmatprep.subr.bf16.mxu0 0
        %488 = vmatpush1.bf16.msra.mxu0 0
        %489 = vmatprep.subr.bf16.mxu0 0
        %490 = vmatpush1.bf16.msra.mxu0 0
        %491 = vmatprep.subr.bf16.mxu0 0
        %492 = vmatpush1.bf16.msra.mxu0 0
        %493 = vmatprep.subr.bf16.mxu0 0
        %494 = vmatpush1.bf16.msra.mxu0 0
        %495 = vmatprep.subr.bf16.mxu0 0
        %496 = vmatpush1.bf16.msra.mxu0 0
        %497 = vmatprep.subr.bf16.mxu0 0
        %498 = vmatpush1.bf16.msra.mxu0 0
        %499 = vmatprep.subr.bf16.mxu0 0
        %500 = vmatpush1.bf16.msra.mxu0 0
        %501 = vmatprep.subr.bf16.mxu0 0
        %502 = vmatpush1.bf16.msra.mxu0 0
        %503 = vmatprep.subr.bf16.mxu0 0
        %504 = vmatpush1.bf16.msra.mxu0 0
        %505 = vmatprep.subr.bf16.mxu0 0
        %506 = vmatpush1.bf16.msra.mxu0 0
        %507 = vmatprep.subr.bf16.mxu0 0
        %508 = vmatpush1.bf16.msra.mxu0 0
        %509 = vmatprep.subr.bf16.mxu0 0
        %510 = vmatpush1.bf16.msra.mxu0 0
        %511 = vmatprep.subr.bf16.mxu0 0
        %512 = vmatpush1.bf16.msra.mxu0 0
        %513 = vmatprep.mubr.bf16.mxu0 0
        %514 = vmatmul.mubr.bf16.gmra.mrb[0].mxu0 %v479
        %v515 = vpop.f32.mrb[0].mxu0
        %v516 = vadd.f32 %v457, %v515
        %v517 = vpop.f32.mrb[0].mxu0
        %v518 = vpop.f32.mrb[0].mxu0
        %v519 = vpop.f32.mrb[0].mxu0
        %520 = vdwg.mxu0
        %v521 = vpack.c.bf16 %v516, %v516
        %v522 = vld [vmem:[#allocation7] sm:$0xf]
        %v523 = vld [vmem:[#allocation7 + $0x4] sm:$0xf]
        %v524 = vld [vmem:[#allocation7 + $0x8] sm:$0xf]
        %v525 = vld [vmem:[#allocation7 + $0xc] sm:$0xf]
        %v526 = vld [vmem:[#allocation7 + $0x10] sm:$0xf]
        %v527 = vld [vmem:[#allocation7 + $0x14] sm:$0xf]
        %v528 = vld [vmem:[%s5] sm:$0x1]
        %v530 = vlaneseq
        %v531 = vshrl.u32 %v530, 7
        %v532 = vsub.s32 0, %v531
        %v533 = vrot.slane %v528, %v532
        %v541 = vunpack.c.l.b16 %v522
        %v542 = vunpack.c.l.b16 %v523
        %v543 = vunpack.c.l.b16 %v524
        %v544 = vunpack.c.l.b16 %v525
        %v545 = vunpack.c.l.b16 %v526
        %v546 = vunpack.c.l.b16 %v527
        %v547 = vpack.c.b16 %v542, %v541
        %v548 = vpack.c.b16 %v544, %v543
        %v549 = vpack.c.b16 %v546, %v545
        %553 = vmatprep.subr.bf16.mxu0 0
        %554 = vmatpush1.bf16.msra.mxu0 %v547
        %555 = vmatprep.subr.bf16.mxu0 0
        %556 = vmatpush1.bf16.msra.mxu0 %v548
        %557 = vmatprep.subr.bf16.mxu0 0
        %558 = vmatpush1.bf16.msra.mxu0 %v549
        %559 = vmatprep.subr.bf16.mxu0 0
        %560 = vmatpush1.bf16.msra.mxu0 0
        %561 = vmatprep.subr.bf16.mxu0 0
        %562 = vmatpush1.bf16.msra.mxu0 0
        %563 = vmatprep.subr.bf16.mxu0 0
        %564 = vmatpush1.bf16.msra.mxu0 0
        %565 = vmatprep.subr.bf16.mxu0 0
        %566 = vmatpush1.bf16.msra.mxu0 0
        %567 = vmatprep.subr.bf16.mxu0 0
        %568 = vmatpush1.bf16.msra.mxu0 0
        %569 = vmatprep.subr.bf16.mxu0 0
        %570 = vmatpush1.bf16.msra.mxu0 0
        %571 = vmatprep.subr.bf16.mxu0 0
        %572 = vmatpush1.bf16.msra.mxu0 0
        %573 = vmatprep.subr.bf16.mxu0 0
        %574 = vmatpush1.bf16.msra.mxu0 0
        %575 = vmatprep.subr.bf16.mxu0 0
        %576 = vmatpush1.bf16.msra.mxu0 0
        %577 = vmatprep.subr.bf16.mxu0 0
        %578 = vmatpush1.bf16.msra.mxu0 0
        %579 = vmatprep.subr.bf16.mxu0 0
        %580 = vmatpush1.bf16.msra.mxu0 0
        %581 = vmatprep.subr.bf16.mxu0 0
        %582 = vmatpush1.bf16.msra.mxu0 0
        %583 = vmatprep.subr.bf16.mxu0 0
        %584 = vmatpush1.bf16.msra.mxu0 0
        %585 = vmatprep.mubr.bf16.mxu0 0
        %586 = vmatmul.mubr.bf16.gmra.mrb[0].mxu0 %v479
        %v587 = vpop.f32.mrb[0].mxu0
        %v588 = vadd.f32 %v533, %v587
        %v589 = vpop.f32.mrb[0].mxu0
        %v590 = vpop.f32.mrb[0].mxu0
        %v591 = vpop.f32.mrb[0].mxu0
        %592 = vdwg.mxu0
        %v593 = vpack.c.bf16 %v588, %v588
        %v594 = vld [vmem:[#allocation8] sm:$0xf]
        %v595 = vld [vmem:[#allocation8 + $0x4] sm:$0xf]
        %v596 = vld [vmem:[#allocation8 + $0x8] sm:$0xf]
        %v597 = vld [vmem:[#allocation8 + $0xc] sm:$0xf]
        %v598 = vld [vmem:[#allocation8 + $0x10] sm:$0xf]
        %v599 = vld [vmem:[#allocation8 + $0x14] sm:$0xf]
        %v600 = vld [vmem:[#allocation10] sm:$0x1]
        %v602 = vlaneseq
        %v603 = vshrl.u32 %v602, 7
        %v604 = vsub.s32 0, %v603
        %v605 = vrot.slane %v600, %v604
        %v613 = vunpack.c.l.b16 %v594
        %v614 = vunpack.c.l.b16 %v595
        %v615 = vunpack.c.l.b16 %v596
        %v616 = vunpack.c.l.b16 %v597
        %v617 = vunpack.c.l.b16 %v598
        %v618 = vunpack.c.l.b16 %v599
        %v619 = vpack.c.b16 %v614, %v613
        %v620 = vpack.c.b16 %v616, %v615
        %v621 = vpack.c.b16 %v618, %v617
        %625 = vmatprep.subr.bf16.mxu0 0
        %626 = vmatpush1.bf16.msra.mxu0 %v619
        %627 = vmatprep.subr.bf16.mxu0 0
        %628 = vmatpush1.bf16.msra.mxu0 %v620
        %629 = vmatprep.subr.bf16.mxu0 0
        %630 = vmatpush1.bf16.msra.mxu0 %v621
        %631 = vmatprep.subr.bf16.mxu0 0
        %632 = vmatpush1.bf16.msra.mxu0 0
        %633 = vmatprep.subr.bf16.mxu0 0
        %634 = vmatpush1.bf16.msra.mxu0 0
        %635 = vmatprep.subr.bf16.mxu0 0
        %636 = vmatpush1.bf16.msra.mxu0 0
        %637 = vmatprep.subr.bf16.mxu0 0
        %638 = vmatpush1.bf16.msra.mxu0 0
        %639 = vmatprep.subr.bf16.mxu0 0
        %640 = vmatpush1.bf16.msra.mxu0 0
        %641 = vmatprep.subr.bf16.mxu0 0
        %642 = vmatpush1.bf16.msra.mxu0 0
        %643 = vmatprep.subr.bf16.mxu0 0
        %644 = vmatpush1.bf16.msra.mxu0 0
        %645 = vmatprep.subr.bf16.mxu0 0
        %646 = vmatpush1.bf16.msra.mxu0 0
        %647 = vmatprep.subr.bf16.mxu0 0
        %648 = vmatpush1.bf16.msra.mxu0 0
        %649 = vmatprep.subr.bf16.mxu0 0
        %650 = vmatpush1.bf16.msra.mxu0 0
        %651 = vmatprep.subr.bf16.mxu0 0
        %652 = vmatpush1.bf16.msra.mxu0 0
        %653 = vmatprep.subr.bf16.mxu0 0
        %654 = vmatpush1.bf16.msra.mxu0 0
        %655 = vmatprep.subr.bf16.mxu0 0
        %656 = vmatpush1.bf16.msra.mxu0 0
        %657 = vmatprep.mubr.bf16.mxu0 0
        %658 = vmatmul.mubr.bf16.gmra.mrb[0].mxu0 %v479
        %v659 = vpop.f32.mrb[0].mxu0
        %v660 = vadd.f32 %v605, %v659
        %v661 = vpop.f32.mrb[0].mxu0
        %v662 = vpop.f32.mrb[0].mxu0
        %v663 = vpop.f32.mrb[0].mxu0
        %664 = vdwg.mxu0
        %v665 = vpack.c.bf16 %v660, %v660
        %v666 = vld [vmem:[%s9] sm:$0xff]
        %vm667 = vcmask 31744
        %v669 = vsel %vm667, %v521, 0
        %v672 = vsel %vm667, %v593, 0
        %674 = vmatprep.subr.bf16.mxu0 0
        %675 = vmatpush1.bf16.xpose.msra.mxu0 %v672
        %676 = vmatprep.subr.bf16.mxu0 0
        %677 = vmatpush1.bf16.xpose.msra.mxu0 0
        %678 = vmatprep.subr.bf16.mxu0 0
        %679 = vmatpush1.bf16.xpose.msra.mxu0 0
        %680 = vmatprep.subr.bf16.mxu0 0
        %681 = vmatpush1.bf16.xpose.msra.mxu0 0
        %682 = vmatprep.subr.bf16.mxu0 0
        %683 = vmatpush1.bf16.xpose.msra.mxu0 0
        %684 = vmatprep.subr.bf16.mxu0 0
        %685 = vmatpush1.bf16.xpose.msra.mxu0 0
        %686 = vmatprep.subr.bf16.mxu0 0
        %687 = vmatpush1.bf16.xpose.msra.mxu0 0
        %688 = vmatprep.subr.bf16.mxu0 0
        %689 = vmatpush1.bf16.xpose.msra.mxu0 0
        %690 = vmatprep.subr.bf16.mxu0 0
        %691 = vmatpush1.bf16.xpose.msra.mxu0 0
        %692 = vmatprep.subr.bf16.mxu0 0
        %693 = vmatpush1.bf16.xpose.msra.mxu0 0
        %694 = vmatprep.subr.bf16.mxu0 0
        %695 = vmatpush1.bf16.xpose.msra.mxu0 0
        %696 = vmatprep.subr.bf16.mxu0 0
        %697 = vmatpush1.bf16.xpose.msra.mxu0 0
        %698 = vmatprep.subr.bf16.mxu0 0
        %699 = vmatpush1.bf16.xpose.msra.mxu0 0
        %700 = vmatprep.subr.bf16.mxu0 0
        %701 = vmatpush1.bf16.xpose.msra.mxu0 0
        %702 = vmatprep.subr.bf16.mxu0 0
        %703 = vmatpush1.bf16.xpose.msra.mxu0 0
        %704 = vmatprep.subr.bf16.mxu0 0
        %705 = vmatpush1.bf16.xpose.msra.mxu0 0
        %706 = vmatprep.mubr.bf16.mxu0 0
        %707 = vmatmul.mubr.bf16.gmra.mrb[0].mxu0 %v669
        %v708 = vpop.f32.mrb[0].mxu0
        %v709 = vadd.f32 %v666, %v708
        %v710 = vpop.f32.mrb[0].mxu0
        %v711 = vpop.f32.mrb[0].mxu0
        %v712 = vpop.f32.mrb[0].mxu0
        %713 = vdwg.mxu0
        %vm714 = vcmask 64512
        %v715 = vsel %vm714, %v709, -inf
        %716 = vmax.xlane.f32.xlu0 %v715
        %v717 = vpop.xlane.xlu0 %716
        %v718 = vsub.f32 %v709, %v717
        %v719 = vmul.f32 %v718, 1.442695
        %v720 = vpow.pop %v719
        %v721 = vsel %vm714, %v720, 0.0
        %722 = vadd.xlane.f32.xlu0 %v721
        %v723 = vpop.xlane.xlu0 %722
        %v724 = vrcp.pop %v723
        %v725 = vmul.f32 %v720, %v724
        %v726 = vpack.c.bf16 %v725, %v725
        %v728 = vsel %vm714, %v726, 0
        %vm730 = vcmask 1043456
        %v732 = vsel %vm730, %v665, 0
        %734 = vmatprep.subr.bf16.mxu0 0
        %735 = vmatpush1.bf16.msra.mxu0 %v732
        %736 = vmatprep.subr.bf16.mxu0 0
        %737 = vmatpush1.bf16.msra.mxu0 0
        %738 = vmatprep.subr.bf16.mxu0 0
        %739 = vmatpush1.bf16.msra.mxu0 0
        %740 = vmatprep.subr.bf16.mxu0 0
        %741 = vmatpush1.bf16.msra.mxu0 0
        %742 = vmatprep.subr.bf16.mxu0 0
        %743 = vmatpush1.bf16.msra.mxu0 0
        %744 = vmatprep.subr.bf16.mxu0 0
        %745 = vmatpush1.bf16.msra.mxu0 0
        %746 = vmatprep.subr.bf16.mxu0 0
        %747 = vmatpush1.bf16.msra.mxu0 0
        %748 = vmatprep.subr.bf16.mxu0 0
        %749 = vmatpush1.bf16.msra.mxu0 0
        %750 = vmatprep.subr.bf16.mxu0 0
        %751 = vmatpush1.bf16.msra.mxu0 0
        %752 = vmatprep.subr.bf16.mxu0 0
        %753 = vmatpush1.bf16.msra.mxu0 0
        %754 = vmatprep.subr.bf16.mxu0 0
        %755 = vmatpush1.bf16.msra.mxu0 0
        %756 = vmatprep.subr.bf16.mxu0 0
        %757 = vmatpush1.bf16.msra.mxu0 0
        %758 = vmatprep.subr.bf16.mxu0 0
        %759 = vmatpush1.bf16.msra.mxu0 0
        %760 = vmatprep.subr.bf16.mxu0 0
        %761 = vmatpush1.bf16.msra.mxu0 0
        %762 = vmatprep.subr.bf16.mxu0 0
        %763 = vmatpush1.bf16.msra.mxu0 0
        %764 = vmatprep.subr.bf16.mxu0 0
        %765 = vmatpush1.bf16.msra.mxu0 0
        %766 = vmatprep.mubr.bf16.mxu0 0
        %767 = vmatmul.mubr.bf16.gmra.mrb[0].mxu0 %v728
        %v768 = vpop.f32.mrb[0].mxu0
        %v769 = vadd.f32 0.0, %v768
        %v770 = vpop.f32.mrb[0].mxu0
        %v771 = vpop.f32.mrb[0].mxu0
        %v772 = vpop.f32.mrb[0].mxu0
        %773 = vdwg.mxu0
        %v774 = vpack.c.bf16 %v769, %v769
        %776 = vrot.lane.b32.xlu0 %v521, 124
        %v777 = vpop.permute.xlu0 %776
        %779 = vrot.lane.b32.xlu0 %v593, 124
        %v780 = vpop.permute.xlu0 %779
        %v782 = vsel %vm667, %v777, 0
        %v785 = vsel %vm667, %v780, 0
        %787 = vmatprep.subr.bf16.mxu0 0
        %788 = vmatpush1.bf16.xpose.msra.mxu0 %v785
        %789 = vmatprep.subr.bf16.mxu0 0
        %790 = vmatpush1.bf16.xpose.msra.mxu0 0
        %791 = vmatprep.subr.bf16.mxu0 0
        %792 = vmatpush1.bf16.xpose.msra.mxu0 0
        %793 = vmatprep.subr.bf16.mxu0 0
        %794 = vmatpush1.bf16.xpose.msra.mxu0 0
        %795 = vmatprep.subr.bf16.mxu0 0
        %796 = vmatpush1.bf16.xpose.msra.mxu0 0
        %797 = vmatprep.subr.bf16.mxu0 0
        %798 = vmatpush1.bf16.xpose.msra.mxu0 0
        %799 = vmatprep.subr.bf16.mxu0 0
        %800 = vmatpush1.bf16.xpose.msra.mxu0 0
        %801 = vmatprep.subr.bf16.mxu0 0
        %802 = vmatpush1.bf16.xpose.msra.mxu0 0
        %803 = vmatprep.subr.bf16.mxu0 0
        %804 = vmatpush1.bf16.xpose.msra.mxu0 0
        %805 = vmatprep.subr.bf16.mxu0 0
        %806 = vmatpush1.bf16.xpose.msra.mxu0 0
        %807 = vmatprep.subr.bf16.mxu0 0
        %808 = vmatpush1.bf16.xpose.msra.mxu0 0
        %809 = vmatprep.subr.bf16.mxu0 0
        %810 = vmatpush1.bf16.xpose.msra.mxu0 0
        %811 = vmatprep.subr.bf16.mxu0 0
        %812 = vmatpush1.bf16.xpose.msra.mxu0 0
        %813 = vmatprep.subr.bf16.mxu0 0
        %814 = vmatpush1.bf16.xpose.msra.mxu0 0
        %815 = vmatprep.subr.bf16.mxu0 0
        %816 = vmatpush1.bf16.xpose.msra.mxu0 0
        %817 = vmatprep.subr.bf16.mxu0 0
        %818 = vmatpush1.bf16.xpose.msra.mxu0 0
        %819 = vmatprep.mubr.bf16.mxu0 0
        %820 = vmatmul.mubr.bf16.gmra.mrb[0].mxu0 %v782
        %v821 = vpop.f32.mrb[0].mxu0
        %v822 = vadd.f32 %v666, %v821
        %v823 = vpop.f32.mrb[0].mxu0
        %v824 = vpop.f32.mrb[0].mxu0
        %v825 = vpop.f32.mrb[0].mxu0
        %826 = vdwg.mxu0
        %v827 = vsel %vm714, %v822, -inf
        %828 = vmax.xlane.f32.xlu0 %v827
        %v829 = vpop.xlane.xlu0 %828
        %v830 = vsub.f32 %v822, %v829
        %v831 = vmul.f32 %v830, 1.442695
        %v832 = vpow.pop %v831
        %v833 = vsel %vm714, %v832, 0.0
        %834 = vadd.xlane.f32.xlu0 %v833
        %v835 = vpop.xlane.xlu0 %834
        %v836 = vrcp.pop %v835
        %v837 = vmul.f32 %v832, %v836
        %v838 = vpack.c.bf16 %v837, %v837
        %840 = vrot.lane.b32.xlu0 %v665, 124
        %v841 = vpop.permute.xlu0 %840
        %v843 = vsel %vm714, %v838, 0
        %v846 = vsel %vm730, %v841, 0
        %848 = vmatprep.subr.bf16.mxu0 0
        %849 = vmatpush1.bf16.msra.mxu0 %v846
        %850 = vmatprep.subr.bf16.mxu0 0
        %851 = vmatpush1.bf16.msra.mxu0 0
        %852 = vmatprep.subr.bf16.mxu0 0
        %853 = vmatpush1.bf16.msra.mxu0 0
        %854 = vmatprep.subr.bf16.mxu0 0
        %855 = vmatpush1.bf16.msra.mxu0 0
        %856 = vmatprep.subr.bf16.mxu0 0
        %857 = vmatpush1.bf16.msra.mxu0 0
        %858 = vmatprep.subr.bf16.mxu0 0
        %859 = vmatpush1.bf16.msra.mxu0 0
        %860 = vmatprep.subr.bf16.mxu0 0
        %861 = vmatpush1.bf16.msra.mxu0 0
        %862 = vmatprep.subr.bf16.mxu0 0
        %863 = vmatpush1.bf16.msra.mxu0 0
        %864 = vmatprep.subr.bf16.mxu0 0
        %865 = vmatpush1.bf16.msra.mxu0 0
        %866 = vmatprep.subr.bf16.mxu0 0
        %867 = vmatpush1.bf16.msra.mxu0 0
        %868 = vmatprep.subr.bf16.mxu0 0
        %869 = vmatpush1.bf16.msra.mxu0 0
        %870 = vmatprep.subr.bf16.mxu0 0
        %871 = vmatpush1.bf16.msra.mxu0 0
        %872 = vmatprep.subr.bf16.mxu0 0
        %873 = vmatpush1.bf16.msra.mxu0 0
        %874 = vmatprep.subr.bf16.mxu0 0
        %875 = vmatpush1.bf16.msra.mxu0 0
        %876 = vmatprep.subr.bf16.mxu0 0
        %877 = vmatpush1.bf16.msra.mxu0 0
        %878 = vmatprep.subr.bf16.mxu0 0
        %879 = vmatpush1.bf16.msra.mxu0 0
        %880 = vmatprep.mubr.bf16.mxu0 0
        %881 = vmatmul.mubr.bf16.gmra.mrb[0].mxu0 %v843
        %v882 = vpop.f32.mrb[0].mxu0
        %v883 = vadd.f32 0.0, %v882
        %v884 = vpop.f32.mrb[0].mxu0
        %v885 = vpop.f32.mrb[0].mxu0
        %v886 = vpop.f32.mrb[0].mxu0
        %887 = vdwg.mxu0
        %v888 = vpack.c.bf16 %v883, %v883
        %889 = vrot.lane.b32.xlu0 %v521, 120
        %v890 = vpop.permute.xlu0 %889
        %891 = vrot.lane.b32.xlu0 %v593, 120
        %v892 = vpop.permute.xlu0 %891
        %v894 = vsel %vm667, %v890, 0
        %v897 = vsel %vm667, %v892, 0
        %899 = vmatprep.subr.bf16.mxu0 0
        %900 = vmatpush1.bf16.xpose.msra.mxu0 %v897
        %901 = vmatprep.subr.bf16.mxu0 0
        %902 = vmatpush1.bf16.xpose.msra.mxu0 0
        %903 = vmatprep.subr.bf16.mxu0 0
        %904 = vmatpush1.bf16.xpose.msra.mxu0 0
        %905 = vmatprep.subr.bf16.mxu0 0
        %906 = vmatpush1.bf16.xpose.msra.mxu0 0
        %907 = vmatprep.subr.bf16.mxu0 0
        %908 = vmatpush1.bf16.xpose.msra.mxu0 0
        %909 = vmatprep.subr.bf16.mxu0 0
        %910 = vmatpush1.bf16.xpose.msra.mxu0 0
        %911 = vmatprep.subr.bf16.mxu0 0
        %912 = vmatpush1.bf16.xpose.msra.mxu0 0
        %913 = vmatprep.subr.bf16.mxu0 0
        %914 = vmatpush1.bf16.xpose.msra.mxu0 0
        %915 = vmatprep.subr.bf16.mxu0 0
        %916 = vmatpush1.bf16.xpose.msra.mxu0 0
        %917 = vmatprep.subr.bf16.mxu0 0
        %918 = vmatpush1.bf16.xpose.msra.mxu0 0
        %919 = vmatprep.subr.bf16.mxu0 0
        %920 = vmatpush1.bf16.xpose.msra.mxu0 0
        %921 = vmatprep.subr.bf16.mxu0 0
        %922 = vmatpush1.bf16.xpose.msra.mxu0 0
        %923 = vmatprep.subr.bf16.mxu0 0
        %924 = vmatpush1.bf16.xpose.msra.mxu0 0
        %925 = vmatprep.subr.bf16.mxu0 0
        %926 = vmatpush1.bf16.xpose.msra.mxu0 0
        %927 = vmatprep.subr.bf16.mxu0 0
        %928 = vmatpush1.bf16.xpose.msra.mxu0 0
        %929 = vmatprep.subr.bf16.mxu0 0
        %930 = vmatpush1.bf16.xpose.msra.mxu0 0
        %931 = vmatprep.mubr.bf16.mxu0 0
        %932 = vmatmul.mubr.bf16.gmra.mrb[0].mxu0 %v894
        %v933 = vpop.f32.mrb[0].mxu0
        %v934 = vadd.f32 %v666, %v933
        %v935 = vpop.f32.mrb[0].mxu0
        %v936 = vpop.f32.mrb[0].mxu0
        %v937 = vpop.f32.mrb[0].mxu0
        %938 = vdwg.mxu0
        %v939 = vsel %vm714, %v934, -inf
        %940 = vmax.xlane.f32.xlu0 %v939
        %v941 = vpop.xlane.xlu0 %940
        %v942 = vsub.f32 %v934, %v941
        %v943 = vmul.f32 %v942, 1.442695
        %v944 = vpow.pop %v943
        %v945 = vsel %vm714, %v944, 0.0
        %946 = vadd.xlane.f32.xlu0 %v945
        %v947 = vpop.xlane.xlu0 %946
        %v948 = vrcp.pop %v947
        %v949 = vmul.f32 %v944, %v948
        %v950 = vpack.c.bf16 %v949, %v949
        %951 = vrot.lane.b32.xlu0 %v665, 120
        %v952 = vpop.permute.xlu0 %951
        %v954 = vsel %vm714, %v950, 0
        %v957 = vsel %vm730, %v952, 0
        %959 = vmatprep.subr.bf16.mxu0 0
        %960 = vmatpush1.bf16.msra.mxu0 %v957
        %961 = vmatprep.subr.bf16.mxu0 0
        %962 = vmatpush1.bf16.msra.mxu0 0
        %963 = vmatprep.subr.bf16.mxu0 0
        %964 = vmatpush1.bf16.msra.mxu0 0
        %965 = vmatprep.subr.bf16.mxu0 0
        %966 = vmatpush1.bf16.msra.mxu0 0
        %967 = vmatprep.subr.bf16.mxu0 0
        %968 = vmatpush1.bf16.msra.mxu0 0
        %969 = vmatprep.subr.bf16.mxu0 0
        %970 = vmatpush1.bf16.msra.mxu0 0
        %971 = vmatprep.subr.bf16.mxu0 0
        %972 = vmatpush1.bf16.msra.mxu0 0
        %973 = vmatprep.subr.bf16.mxu0 0
        %974 = vmatpush1.bf16.msra.mxu0 0
        %975 = vmatprep.subr.bf16.mxu0 0
        %976 = vmatpush1.bf16.msra.mxu0 0
        %977 = vmatprep.subr.bf16.mxu0 0
        %978 = vmatpush1.bf16.msra.mxu0 0
        %979 = vmatprep.subr.bf16.mxu0 0
        %980 = vmatpush1.bf16.msra.mxu0 0
        %981 = vmatprep.subr.bf16.mxu0 0
        %982 = vmatpush1.bf16.msra.mxu0 0
        %983 = vmatprep.subr.bf16.mxu0 0
        %984 = vmatpush1.bf16.msra.mxu0 0
        %985 = vmatprep.subr.bf16.mxu0 0
        %986 = vmatpush1.bf16.msra.mxu0 0
        %987 = vmatprep.subr.bf16.mxu0 0
        %988 = vmatpush1.bf16.msra.mxu0 0
        %989 = vmatprep.subr.bf16.mxu0 0
        %990 = vmatpush1.bf16.msra.mxu0 0
        %991 = vmatprep.mubr.bf16.mxu0 0
        %992 = vmatmul.mubr.bf16.gmra.mrb[0].mxu0 %v954
        %v993 = vpop.f32.mrb[0].mxu0
        %v994 = vadd.f32 0.0, %v993
        %v995 = vpop.f32.mrb[0].mxu0
        %v996 = vpop.f32.mrb[0].mxu0
        %v997 = vpop.f32.mrb[0].mxu0
        %998 = vdwg.mxu0
        %v999 = vpack.c.bf16 %v994, %v994
        %1000 = vrot.lane.b32.xlu0 %v521, 116
        %v1001 = vpop.permute.xlu0 %1000
        %1002 = vrot.lane.b32.xlu0 %v593, 116
        %v1003 = vpop.permute.xlu0 %1002
        %v1005 = vsel %vm667, %v1001, 0
        %v1008 = vsel %vm667, %v1003, 0
        %1010 = vmatprep.subr.bf16.mxu0 0
        %1011 = vmatpush1.bf16.xpose.msra.mxu0 %v1008
        %1012 = vmatprep.subr.bf16.mxu0 0
        %1013 = vmatpush1.bf16.xpose.msra.mxu0 0
        %1014 = vmatprep.subr.bf16.mxu0 0
        %1015 = vmatpush1.bf16.xpose.msra.mxu0 0
        %1016 = vmatprep.subr.bf16.mxu0 0
        %1017 = vmatpush1.bf16.xpose.msra.mxu0 0
        %1018 = vmatprep.subr.bf16.mxu0 0
        %1019 = vmatpush1.bf16.xpose.msra.mxu0 0
        %1020 = vmatprep.subr.bf16.mxu0 0
        %1021 = vmatpush1.bf16.xpose.msra.mxu0 0
        %1022 = vmatprep.subr.bf16.mxu0 0
        %1023 = vmatpush1.bf16.xpose.msra.mxu0 0
        %1024 = vmatprep.subr.bf16.mxu0 0
        %1025 = vmatpush1.bf16.xpose.msra.mxu0 0
        %1026 = vmatprep.subr.bf16.mxu0 0
        %1027 = vmatpush1.bf16.xpose.msra.mxu0 0
        %1028 = vmatprep.subr.bf16.mxu0 0
        %1029 = vmatpush1.bf16.xpose.msra.mxu0 0
        %1030 = vmatprep.subr.bf16.mxu0 0
        %1031 = vmatpush1.bf16.xpose.msra.mxu0 0
        %1032 = vmatprep.subr.bf16.mxu0 0
        %1033 = vmatpush1.bf16.xpose.msra.mxu0 0
        %1034 = vmatprep.subr.bf16.mxu0 0
        %1035 = vmatpush1.bf16.xpose.msra.mxu0 0
        %1036 = vmatprep.subr.bf16.mxu0 0
        %1037 = vmatpush1.bf16.xpose.msra.mxu0 0
        %1038 = vmatprep.subr.bf16.mxu0 0
        %1039 = vmatpush1.bf16.xpose.msra.mxu0 0
        %1040 = vmatprep.subr.bf16.mxu0 0
        %1041 = vmatpush1.bf16.xpose.msra.mxu0 0
        %1042 = vmatprep.mubr.bf16.mxu0 0
        %1043 = vmatmul.mubr.bf16.gmra.mrb[0].mxu0 %v1005
        %v1044 = vpop.f32.mrb[0].mxu0
        %v1045 = vadd.f32 %v666, %v1044
        %v1046 = vpop.f32.mrb[0].mxu0
        %v1047 = vpop.f32.mrb[0].mxu0
        %v1048 = vpop.f32.mrb[0].mxu0
        %1049 = vdwg.mxu0
        %v1050 = vsel %vm714, %v1045, -inf
        %1051 = vmax.xlane.f32.xlu0 %v1050
        %v1052 = vpop.xlane.xlu0 %1051
        %v1053 = vsub.f32 %v1045, %v1052
        %v1054 = vmul.f32 %v1053, 1.442695
        %v1055 = vpow.pop %v1054
        %v1056 = vsel %vm714, %v1055, 0.0
        %1057 = vadd.xlane.f32.xlu0 %v1056
        %v1058 = vpop.xlane.xlu0 %1057
        %v1059 = vrcp.pop %v1058
        %v1060 = vmul.f32 %v1055, %v1059
        %v1061 = vpack.c.bf16 %v1060, %v1060
        %1062 = vrot.lane.b32.xlu0 %v665, 116
        %v1063 = vpop.permute.xlu0 %1062
        %v1065 = vsel %vm714, %v1061, 0
        %v1068 = vsel %vm730, %v1063, 0
        %1070 = vmatprep.subr.bf16.mxu0 0
        %1071 = vmatpush1.bf16.msra.mxu0 %v1068
        %1072 = vmatprep.subr.bf16.mxu0 0
        %1073 = vmatpush1.bf16.msra.mxu0 0
        %1074 = vmatprep.subr.bf16.mxu0 0
        %1075 = vmatpush1.bf16.msra.mxu0 0
        %1076 = vmatprep.subr.bf16.mxu0 0
        %1077 = vmatpush1.bf16.msra.mxu0 0
        %1078 = vmatprep.subr.bf16.mxu0 0
        %1079 = vmatpush1.bf16.msra.mxu0 0
        %1080 = vmatprep.subr.bf16.mxu0 0
        %1081 = vmatpush1.bf16.msra.mxu0 0
        %1082 = vmatprep.subr.bf16.mxu0 0
        %1083 = vmatpush1.bf16.msra.mxu0 0
        %1084 = vmatprep.subr.bf16.mxu0 0
        %1085 = vmatpush1.bf16.msra.mxu0 0
        %1086 = vmatprep.subr.bf16.mxu0 0
        %1087 = vmatpush1.bf16.msra.mxu0 0
        %1088 = vmatprep.subr.bf16.mxu0 0
        %1089 = vmatpush1.bf16.msra.mxu0 0
        %1090 = vmatprep.subr.bf16.mxu0 0
        %1091 = vmatpush1.bf16.msra.mxu0 0
        %1092 = vmatprep.subr.bf16.mxu0 0
        %1093 = vmatpush1.bf16.msra.mxu0 0
        %1094 = vmatprep.subr.bf16.mxu0 0
        %1095 = vmatpush1.bf16.msra.mxu0 0
        %1096 = vmatprep.subr.bf16.mxu0 0
        %1097 = vmatpush1.bf16.msra.mxu0 0
        %1098 = vmatprep.subr.bf16.mxu0 0
        %1099 = vmatpush1.bf16.msra.mxu0 0
        %1100 = vmatprep.subr.bf16.mxu0 0
        %1101 = vmatpush1.bf16.msra.mxu0 0
        %1102 = vmatprep.mubr.bf16.mxu0 0
        %1103 = vmatmul.mubr.bf16.gmra.mrb[0].mxu0 %v1065
        %v1104 = vpop.f32.mrb[0].mxu0
        %v1105 = vadd.f32 0.0, %v1104
        %v1106 = vpop.f32.mrb[0].mxu0
        %v1107 = vpop.f32.mrb[0].mxu0
        %v1108 = vpop.f32.mrb[0].mxu0
        %1109 = vdwg.mxu0
        %v1110 = vpack.c.bf16 %v1105, %v1105
        %1111 = vrot.lane.b32.xlu0 %v521, 112
        %v1112 = vpop.permute.xlu0 %1111
        %1113 = vrot.lane.b32.xlu0 %v593, 112
        %v1114 = vpop.permute.xlu0 %1113
        %v1116 = vsel %vm667, %v1112, 0
        %v1119 = vsel %vm667, %v1114, 0
        %1121 = vmatprep.subr.bf16.mxu0 0
        %1122 = vmatpush1.bf16.xpose.msra.mxu0 %v1119
        %1123 = vmatprep.subr.bf16.mxu0 0
        %1124 = vmatpush1.bf16.xpose.msra.mxu0 0
        %1125 = vmatprep.subr.bf16.mxu0 0
        %1126 = vmatpush1.bf16.xpose.msra.mxu0 0
        %1127 = vmatprep.subr.bf16.mxu0 0
        %1128 = vmatpush1.bf16.xpose.msra.mxu0 0
        %1129 = vmatprep.subr.bf16.mxu0 0
        %1130 = vmatpush1.bf16.xpose.msra.mxu0 0
        %1131 = vmatprep.subr.bf16.mxu0 0
        %1132 = vmatpush1.bf16.xpose.msra.mxu0 0
        %1133 = vmatprep.subr.bf16.mxu0 0
        %1134 = vmatpush1.bf16.xpose.msra.mxu0 0
        %1135 = vmatprep.subr.bf16.mxu0 0
        %1136 = vmatpush1.bf16.xpose.msra.mxu0 0
        %1137 = vmatprep.subr.bf16.mxu0 0
        %1138 = vmatpush1.bf16.xpose.msra.mxu0 0
        %1139 = vmatprep.subr.bf16.mxu0 0
        %1140 = vmatpush1.bf16.xpose.msra.mxu0 0
        %1141 = vmatprep.subr.bf16.mxu0 0
        %1142 = vmatpush1.bf16.xpose.msra.mxu0 0
        %1143 = vmatprep.subr.bf16.mxu0 0
        %1144 = vmatpush1.bf16.xpose.msra.mxu0 0
        %1145 = vmatprep.subr.bf16.mxu0 0
        %1146 = vmatpush1.bf16.xpose.msra.mxu0 0
        %1147 = vmatprep.subr.bf16.mxu0 0
        %1148 = vmatpush1.bf16.xpose.msra.mxu0 0
        %1149 = vmatprep.subr.bf16.mxu0 0
        %1150 = vmatpush1.bf16.xpose.msra.mxu0 0
        %1151 = vmatprep.subr.bf16.mxu0 0
        %1152 = vmatpush1.bf16.xpose.msra.mxu0 0
        %1153 = vmatprep.mubr.bf16.mxu0 0
        %1154 = vmatmul.mubr.bf16.gmra.mrb[0].mxu0 %v1116
        %v1155 = vpop.f32.mrb[0].mxu0
        %v1156 = vadd.f32 %v666, %v1155
        %v1157 = vpop.f32.mrb[0].mxu0
        %v1158 = vpop.f32.mrb[0].mxu0
        %v1159 = vpop.f32.mrb[0].mxu0
        %1160 = vdwg.mxu0
        %v1161 = vsel %vm714, %v1156, -inf
        %1162 = vmax.xlane.f32.xlu0 %v1161
        %v1163 = vpop.xlane.xlu0 %1162
        %v1164 = vsub.f32 %v1156, %v1163
        %v1165 = vmul.f32 %v1164, 1.442695
        %v1166 = vpow.pop %v1165
        %v1167 = vsel %vm714, %v1166, 0.0
        %1168 = vadd.xlane.f32.xlu0 %v1167
        %v1169 = vpop.xlane.xlu0 %1168
        %v1170 = vrcp.pop %v1169
        %v1171 = vmul.f32 %v1166, %v1170
        %v1172 = vpack.c.bf16 %v1171, %v1171
        %1173 = vrot.lane.b32.xlu0 %v665, 112
        %v1174 = vpop.permute.xlu0 %1173
        %v1176 = vsel %vm714, %v1172, 0
        %v1179 = vsel %vm730, %v1174, 0
        %1181 = vmatprep.subr.bf16.mxu0 0
        %1182 = vmatpush1.bf16.msra.mxu0 %v1179
        %1183 = vmatprep.subr.bf16.mxu0 0
        %1184 = vmatpush1.bf16.msra.mxu0 0
        %1185 = vmatprep.subr.bf16.mxu0 0
        %1186 = vmatpush1.bf16.msra.mxu0 0
        %1187 = vmatprep.subr.bf16.mxu0 0
        %1188 = vmatpush1.bf16.msra.mxu0 0
        %1189 = vmatprep.subr.bf16.mxu0 0
        %1190 = vmatpush1.bf16.msra.mxu0 0
        %1191 = vmatprep.subr.bf16.mxu0 0
        %1192 = vmatpush1.bf16.msra.mxu0 0
        %1193 = vmatprep.subr.bf16.mxu0 0
        %1194 = vmatpush1.bf16.msra.mxu0 0
        %1195 = vmatprep.subr.bf16.mxu0 0
        %1196 = vmatpush1.bf16.msra.mxu0 0
        %1197 = vmatprep.subr.bf16.mxu0 0
        %1198 = vmatpush1.bf16.msra.mxu0 0
        %1199 = vmatprep.subr.bf16.mxu0 0
        %1200 = vmatpush1.bf16.msra.mxu0 0
        %1201 = vmatprep.subr.bf16.mxu0 0
        %1202 = vmatpush1.bf16.msra.mxu0 0
        %1203 = vmatprep.subr.bf16.mxu0 0
        %1204 = vmatpush1.bf16.msra.mxu0 0
        %1205 = vmatprep.subr.bf16.mxu0 0
        %1206 = vmatpush1.bf16.msra.mxu0 0
        %1207 = vmatprep.subr.bf16.mxu0 0
        %1208 = vmatpush1.bf16.msra.mxu0 0
        %1209 = vmatprep.subr.bf16.mxu0 0
        %1210 = vmatpush1.bf16.msra.mxu0 0
        %1211 = vmatprep.subr.bf16.mxu0 0
        %1212 = vmatpush1.bf16.msra.mxu0 0
        %1213 = vmatprep.mubr.bf16.mxu0 0
        %1214 = vmatmul.mubr.bf16.gmra.mrb[0].mxu0 %v1176
        %v1215 = vpop.f32.mrb[0].mxu0
        %v1216 = vadd.f32 0.0, %v1215
        %v1217 = vpop.f32.mrb[0].mxu0
        %v1218 = vpop.f32.mrb[0].mxu0
        %v1219 = vpop.f32.mrb[0].mxu0
        %1220 = vdwg.mxu0
        %v1221 = vpack.c.bf16 %v1216, %v1216
        %1222 = vrot.lane.b32.xlu0 %v521, 108
        %v1223 = vpop.permute.xlu0 %1222
        %1224 = vrot.lane.b32.xlu0 %v593, 108
        %v1225 = vpop.permute.xlu0 %1224
        %v1227 = vsel %vm667, %v1223, 0
        %v1230 = vsel %vm667, %v1225, 0
        %1232 = vmatprep.subr.bf16.mxu0 0
        %1233 = vmatpush1.bf16.xpose.msra.mxu0 %v1230
        %1234 = vmatprep.subr.bf16.mxu0 0
        %1235 = vmatpush1.bf16.xpose.msra.mxu0 0
        %1236 = vmatprep.subr.bf16.mxu0 0
        %1237 = vmatpush1.bf16.xpose.msra.mxu0 0
        %1238 = vmatprep.subr.bf16.mxu0 0
        %1239 = vmatpush1.bf16.xpose.msra.mxu0 0
        %1240 = vmatprep.subr.bf16.mxu0 0
        %1241 = vmatpush1.bf16.xpose.msra.mxu0 0
        %1242 = vmatprep.subr.bf16.mxu0 0
        %1243 = vmatpush1.bf16.xpose.msra.mxu0 0
        %1244 = vmatprep.subr.bf16.mxu0 0
        %1245 = vmatpush1.bf16.xpose.msra.mxu0 0
        %1246 = vmatprep.subr.bf16.mxu0 0
        %1247 = vmatpush1.bf16.xpose.msra.mxu0 0
        %1248 = vmatprep.subr.bf16.mxu0 0
        %1249 = vmatpush1.bf16.xpose.msra.mxu0 0
        %1250 = vmatprep.subr.bf16.mxu0 0
        %1251 = vmatpush1.bf16.xpose.msra.mxu0 0
        %1252 = vmatprep.subr.bf16.mxu0 0
        %1253 = vmatpush1.bf16.xpose.msra.mxu0 0
        %1254 = vmatprep.subr.bf16.mxu0 0
        %1255 = vmatpush1.bf16.xpose.msra.mxu0 0
        %1256 = vmatprep.subr.bf16.mxu0 0
        %1257 = vmatpush1.bf16.xpose.msra.mxu0 0
        %1258 = vmatprep.subr.bf16.mxu0 0
        %1259 = vmatpush1.bf16.xpose.msra.mxu0 0
        %1260 = vmatprep.subr.bf16.mxu0 0
        %1261 = vmatpush1.bf16.xpose.msra.mxu0 0
        %1262 = vmatprep.subr.bf16.mxu0 0
        %1263 = vmatpush1.bf16.xpose.msra.mxu0 0
        %1264 = vmatprep.mubr.bf16.mxu0 0
        %1265 = vmatmul.mubr.bf16.gmra.mrb[0].mxu0 %v1227
        %v1266 = vpop.f32.mrb[0].mxu0
        %v1267 = vadd.f32 %v666, %v1266
        %v1268 = vpop.f32.mrb[0].mxu0
        %v1269 = vpop.f32.mrb[0].mxu0
        %v1270 = vpop.f32.mrb[0].mxu0
        %1271 = vdwg.mxu0
        %v1272 = vsel %vm714, %v1267, -inf
        %1273 = vmax.xlane.f32.xlu0 %v1272
        %v1274 = vpop.xlane.xlu0 %1273
        %v1275 = vsub.f32 %v1267, %v1274
        %v1276 = vmul.f32 %v1275, 1.442695
        %v1277 = vpow.pop %v1276
        %v1278 = vsel %vm714, %v1277, 0.0
        %1279 = vadd.xlane.f32.xlu0 %v1278
        %v1280 = vpop.xlane.xlu0 %1279
        %v1281 = vrcp.pop %v1280
        %v1282 = vmul.f32 %v1277, %v1281
        %v1283 = vpack.c.bf16 %v1282, %v1282
        %1284 = vrot.lane.b32.xlu0 %v665, 108
        %v1285 = vpop.permute.xlu0 %1284
        %v1287 = vsel %vm714, %v1283, 0
        %v1290 = vsel %vm730, %v1285, 0
        %1292 = vmatprep.subr.bf16.mxu0 0
        %1293 = vmatpush1.bf16.msra.mxu0 %v1290
        %1294 = vmatprep.subr.bf16.mxu0 0
        %1295 = vmatpush1.bf16.msra.mxu0 0
        %1296 = vmatprep.subr.bf16.mxu0 0
        %1297 = vmatpush1.bf16.msra.mxu0 0
        %1298 = vmatprep.subr.bf16.mxu0 0
        %1299 = vmatpush1.bf16.msra.mxu0 0
        %1300 = vmatprep.subr.bf16.mxu0 0
        %1301 = vmatpush1.bf16.msra.mxu0 0
        %1302 = vmatprep.subr.bf16.mxu0 0
        %1303 = vmatpush1.bf16.msra.mxu0 0
        %1304 = vmatprep.subr.bf16.mxu0 0
        %1305 = vmatpush1.bf16.msra.mxu0 0
        %1306 = vmatprep.subr.bf16.mxu0 0
        %1307 = vmatpush1.bf16.msra.mxu0 0
        %1308 = vmatprep.subr.bf16.mxu0 0
        %1309 = vmatpush1.bf16.msra.mxu0 0
        %1310 = vmatprep.subr.bf16.mxu0 0
        %1311 = vmatpush1.bf16.msra.mxu0 0
        %1312 = vmatprep.subr.bf16.mxu0 0
        %1313 = vmatpush1.bf16.msra.mxu0 0
        %1314 = vmatprep.subr.bf16.mxu0 0
        %1315 = vmatpush1.bf16.msra.mxu0 0
        %1316 = vmatprep.subr.bf16.mxu0 0
        %1317 = vmatpush1.bf16.msra.mxu0 0
        %1318 = vmatprep.subr.bf16.mxu0 0
        %1319 = vmatpush1.bf16.msra.mxu0 0
        %1320 = vmatprep.subr.bf16.mxu0 0
        %1321 = vmatpush1.bf16.msra.mxu0 0
        %1322 = vmatprep.subr.bf16.mxu0 0
        %1323 = vmatpush1.bf16.msra.mxu0 0
        %1324 = vmatprep.mubr.bf16.mxu0 0
        %1325 = vmatmul.mubr.bf16.gmra.mrb[0].mxu0 %v1287
        %v1326 = vpop.f32.mrb[0].mxu0
        %v1327 = vadd.f32 0.0, %v1326
        %v1328 = vpop.f32.mrb[0].mxu0
        %v1329 = vpop.f32.mrb[0].mxu0
        %v1330 = vpop.f32.mrb[0].mxu0
        %1331 = vdwg.mxu0
        %v1332 = vpack.c.bf16 %v1327, %v1327
        %1333 = vrot.lane.b32.xlu0 %v521, 104
        %v1334 = vpop.permute.xlu0 %1333
        %1335 = vrot.lane.b32.xlu0 %v593, 104
        %v1336 = vpop.permute.xlu0 %1335
        %v1338 = vsel %vm667, %v1334, 0
        %v1341 = vsel %vm667, %v1336, 0
        %1343 = vmatprep.subr.bf16.mxu0 0
        %1344 = vmatpush1.bf16.xpose.msra.mxu0 %v1341
        %1345 = vmatprep.subr.bf16.mxu0 0
        %1346 = vmatpush1.bf16.xpose.msra.mxu0 0
        %1347 = vmatprep.subr.bf16.mxu0 0
        %1348 = vmatpush1.bf16.xpose.msra.mxu0 0
        %1349 = vmatprep.subr.bf16.mxu0 0
        %1350 = vmatpush1.bf16.xpose.msra.mxu0 0
        %1351 = vmatprep.subr.bf16.mxu0 0
        %1352 = vmatpush1.bf16.xpose.msra.mxu0 0
        %1353 = vmatprep.subr.bf16.mxu0 0
        %1354 = vmatpush1.bf16.xpose.msra.mxu0 0
        %1355 = vmatprep.subr.bf16.mxu0 0
        %1356 = vmatpush1.bf16.xpose.msra.mxu0 0
        %1357 = vmatprep.subr.bf16.mxu0 0
        %1358 = vmatpush1.bf16.xpose.msra.mxu0 0
        %1359 = vmatprep.subr.bf16.mxu0 0
        %1360 = vmatpush1.bf16.xpose.msra.mxu0 0
        %1361 = vmatprep.subr.bf16.mxu0 0
        %1362 = vmatpush1.bf16.xpose.msra.mxu0 0
        %1363 = vmatprep.subr.bf16.mxu0 0
        %1364 = vmatpush1.bf16.xpose.msra.mxu0 0
        %1365 = vmatprep.subr.bf16.mxu0 0
        %1366 = vmatpush1.bf16.xpose.msra.mxu0 0
        %1367 = vmatprep.subr.bf16.mxu0 0
        %1368 = vmatpush1.bf16.xpose.msra.mxu0 0
        %1369 = vmatprep.subr.bf16.mxu0 0
        %1370 = vmatpush1.bf16.xpose.msra.mxu0 0
        %1371 = vmatprep.subr.bf16.mxu0 0
        %1372 = vmatpush1.bf16.xpose.msra.mxu0 0
        %1373 = vmatprep.subr.bf16.mxu0 0
        %1374 = vmatpush1.bf16.xpose.msra.mxu0 0
        %1375 = vmatprep.mubr.bf16.mxu0 0
        %1376 = vmatmul.mubr.bf16.gmra.mrb[0].mxu0 %v1338
        %v1377 = vpop.f32.mrb[0].mxu0
        %v1378 = vadd.f32 %v666, %v1377
        %v1379 = vpop.f32.mrb[0].mxu0
        %v1380 = vpop.f32.mrb[0].mxu0
        %v1381 = vpop.f32.mrb[0].mxu0
        %1382 = vdwg.mxu0
        %v1383 = vsel %vm714, %v1378, -inf
        %1384 = vmax.xlane.f32.xlu0 %v1383
        %v1385 = vpop.xlane.xlu0 %1384
        %v1386 = vsub.f32 %v1378, %v1385
        %v1387 = vmul.f32 %v1386, 1.442695
        %v1388 = vpow.pop %v1387
        %v1389 = vsel %vm714, %v1388, 0.0
        %1390 = vadd.xlane.f32.xlu0 %v1389
        %v1391 = vpop.xlane.xlu0 %1390
        %v1392 = vrcp.pop %v1391
        %v1393 = vmul.f32 %v1388, %v1392
        %v1394 = vpack.c.bf16 %v1393, %v1393
        %1395 = vrot.lane.b32.xlu0 %v665, 104
        %v1396 = vpop.permute.xlu0 %1395
        %v1398 = vsel %vm714, %v1394, 0
        %v1401 = vsel %vm730, %v1396, 0
        %1403 = vmatprep.subr.bf16.mxu0 0
        %1404 = vmatpush1.bf16.msra.mxu0 %v1401
        %1405 = vmatprep.subr.bf16.mxu0 0
        %1406 = vmatpush1.bf16.msra.mxu0 0
        %1407 = vmatprep.subr.bf16.mxu0 0
        %1408 = vmatpush1.bf16.msra.mxu0 0
        %1409 = vmatprep.subr.bf16.mxu0 0
        %1410 = vmatpush1.bf16.msra.mxu0 0
        %1411 = vmatprep.subr.bf16.mxu0 0
        %1412 = vmatpush1.bf16.msra.mxu0 0
        %1413 = vmatprep.subr.bf16.mxu0 0
        %1414 = vmatpush1.bf16.msra.mxu0 0
        %1415 = vmatprep.subr.bf16.mxu0 0
        %1416 = vmatpush1.bf16.msra.mxu0 0
        %1417 = vmatprep.subr.bf16.mxu0 0
        %1418 = vmatpush1.bf16.msra.mxu0 0
        %1419 = vmatprep.subr.bf16.mxu0 0
        %1420 = vmatpush1.bf16.msra.mxu0 0
        %1421 = vmatprep.subr.bf16.mxu0 0
        %1422 = vmatpush1.bf16.msra.mxu0 0
        %1423 = vmatprep.subr.bf16.mxu0 0
        %1424 = vmatpush1.bf16.msra.mxu0 0
        %1425 = vmatprep.subr.bf16.mxu0 0
        %1426 = vmatpush1.bf16.msra.mxu0 0
        %1427 = vmatprep.subr.bf16.mxu0 0
        %1428 = vmatpush1.bf16.msra.mxu0 0
        %1429 = vmatprep.subr.bf16.mxu0 0
        %1430 = vmatpush1.bf16.msra.mxu0 0
        %1431 = vmatprep.subr.bf16.mxu0 0
        %1432 = vmatpush1.bf16.msra.mxu0 0
        %1433 = vmatprep.subr.bf16.mxu0 0
        %1434 = vmatpush1.bf16.msra.mxu0 0
        %1435 = vmatprep.mubr.bf16.mxu0 0
        %1436 = vmatmul.mubr.bf16.gmra.mrb[0].mxu0 %v1398
        %v1437 = vpop.f32.mrb[0].mxu0
        %v1438 = vadd.f32 0.0, %v1437
        %v1439 = vpop.f32.mrb[0].mxu0
        %v1440 = vpop.f32.mrb[0].mxu0
        %v1441 = vpop.f32.mrb[0].mxu0
        %1442 = vdwg.mxu0
        %v1443 = vpack.c.bf16 %v1438, %v1438
        %1444 = vrot.lane.b32.xlu0 %v521, 100
        %v1445 = vpop.permute.xlu0 %1444
        %1446 = vrot.lane.b32.xlu0 %v593, 100
        %v1447 = vpop.permute.xlu0 %1446
        %v1449 = vsel %vm667, %v1445, 0
        %v1452 = vsel %vm667, %v1447, 0
        %1454 = vmatprep.subr.bf16.mxu0 0
        %1455 = vmatpush1.bf16.xpose.msra.mxu0 %v1452
        %1456 = vmatprep.subr.bf16.mxu0 0
        %1457 = vmatpush1.bf16.xpose.msra.mxu0 0
        %1458 = vmatprep.subr.bf16.mxu0 0
        %1459 = vmatpush1.bf16.xpose.msra.mxu0 0
        %1460 = vmatprep.subr.bf16.mxu0 0
        %1461 = vmatpush1.bf16.xpose.msra.mxu0 0
        %1462 = vmatprep.subr.bf16.mxu0 0
        %1463 = vmatpush1.bf16.xpose.msra.mxu0 0
        %1464 = vmatprep.subr.bf16.mxu0 0
        %1465 = vmatpush1.bf16.xpose.msra.mxu0 0
        %1466 = vmatprep.subr.bf16.mxu0 0
        %1467 = vmatpush1.bf16.xpose.msra.mxu0 0
        %1468 = vmatprep.subr.bf16.mxu0 0
        %1469 = vmatpush1.bf16.xpose.msra.mxu0 0
        %1470 = vmatprep.subr.bf16.mxu0 0
        %1471 = vmatpush1.bf16.xpose.msra.mxu0 0
        %1472 = vmatprep.subr.bf16.mxu0 0
        %1473 = vmatpush1.bf16.xpose.msra.mxu0 0
        %1474 = vmatprep.subr.bf16.mxu0 0
        %1475 = vmatpush1.bf16.xpose.msra.mxu0 0
        %1476 = vmatprep.subr.bf16.mxu0 0
        %1477 = vmatpush1.bf16.xpose.msra.mxu0 0
        %1478 = vmatprep.subr.bf16.mxu0 0
        %1479 = vmatpush1.bf16.xpose.msra.mxu0 0
        %1480 = vmatprep.subr.bf16.mxu0 0
        %1481 = vmatpush1.bf16.xpose.msra.mxu0 0
        %1482 = vmatprep.subr.bf16.mxu0 0
        %1483 = vmatpush1.bf16.xpose.msra.mxu0 0
        %1484 = vmatprep.subr.bf16.mxu0 0
        %1485 = vmatpush1.bf16.xpose.msra.mxu0 0
        %1486 = vmatprep.mubr.bf16.mxu0 0
        %1487 = vmatmul.mubr.bf16.gmra.mrb[0].mxu0 %v1449
        %v1488 = vpop.f32.mrb[0].mxu0
        %v1489 = vadd.f32 %v666, %v1488
        %v1490 = vpop.f32.mrb[0].mxu0
        %v1491 = vpop.f32.mrb[0].mxu0
        %v1492 = vpop.f32.mrb[0].mxu0
        %1493 = vdwg.mxu0
        %v1494 = vsel %vm714, %v1489, -inf
        %1495 = vmax.xlane.f32.xlu0 %v1494
        %v1496 = vpop.xlane.xlu0 %1495
        %v1497 = vsub.f32 %v1489, %v1496
        %v1498 = vmul.f32 %v1497, 1.442695
        %v1499 = vpow.pop %v1498
        %v1500 = vsel %vm714, %v1499, 0.0
        %1501 = vadd.xlane.f32.xlu0 %v1500
        %v1502 = vpop.xlane.xlu0 %1501
        %v1503 = vrcp.pop %v1502
        %v1504 = vmul.f32 %v1499, %v1503
        %v1505 = vpack.c.bf16 %v1504, %v1504
        %1506 = vrot.lane.b32.xlu0 %v665, 100
        %v1507 = vpop.permute.xlu0 %1506
        %v1509 = vsel %vm714, %v1505, 0
        %v1512 = vsel %vm730, %v1507, 0
        %1514 = vmatprep.subr.bf16.mxu0 0
        %1515 = vmatpush1.bf16.msra.mxu0 %v1512
        %1516 = vmatprep.subr.bf16.mxu0 0
        %1517 = vmatpush1.bf16.msra.mxu0 0
        %1518 = vmatprep.subr.bf16.mxu0 0
        %1519 = vmatpush1.bf16.msra.mxu0 0
        %1520 = vmatprep.subr.bf16.mxu0 0
        %1521 = vmatpush1.bf16.msra.mxu0 0
        %1522 = vmatprep.subr.bf16.mxu0 0
        %1523 = vmatpush1.bf16.msra.mxu0 0
        %1524 = vmatprep.subr.bf16.mxu0 0
        %1525 = vmatpush1.bf16.msra.mxu0 0
        %1526 = vmatprep.subr.bf16.mxu0 0
        %1527 = vmatpush1.bf16.msra.mxu0 0
        %1528 = vmatprep.subr.bf16.mxu0 0
        %1529 = vmatpush1.bf16.msra.mxu0 0
        %1530 = vmatprep.subr.bf16.mxu0 0
        %1531 = vmatpush1.bf16.msra.mxu0 0
        %1532 = vmatprep.subr.bf16.mxu0 0
        %1533 = vmatpush1.bf16.msra.mxu0 0
        %1534 = vmatprep.subr.bf16.mxu0 0
        %1535 = vmatpush1.bf16.msra.mxu0 0
        %1536 = vmatprep.subr.bf16.mxu0 0
        %1537 = vmatpush1.bf16.msra.mxu0 0
        %1538 = vmatprep.subr.bf16.mxu0 0
        %1539 = vmatpush1.bf16.msra.mxu0 0
        %1540 = vmatprep.subr.bf16.mxu0 0
        %1541 = vmatpush1.bf16.msra.mxu0 0
        %1542 = vmatprep.subr.bf16.mxu0 0
        %1543 = vmatpush1.bf16.msra.mxu0 0
        %1544 = vmatprep.subr.bf16.mxu0 0
        %1545 = vmatpush1.bf16.msra.mxu0 0
        %1546 = vmatprep.mubr.bf16.mxu0 0
        %1547 = vmatmul.mubr.bf16.gmra.mrb[0].mxu0 %v1509
        %v1548 = vpop.f32.mrb[0].mxu0
        %v1549 = vadd.f32 0.0, %v1548
        %v1550 = vpop.f32.mrb[0].mxu0
        %v1551 = vpop.f32.mrb[0].mxu0
        %v1552 = vpop.f32.mrb[0].mxu0
        %1553 = vdwg.mxu0
        %v1554 = vpack.c.bf16 %v1549, %v1549
        %1555 = vrot.lane.b32.xlu0 %v521, 96
        %v1556 = vpop.permute.xlu0 %1555
        %1557 = vrot.lane.b32.xlu0 %v593, 96
        %v1558 = vpop.permute.xlu0 %1557
        %v1560 = vsel %vm667, %v1556, 0
        %v1563 = vsel %vm667, %v1558, 0
        %1565 = vmatprep.subr.bf16.mxu0 0
        %1566 = vmatpush1.bf16.xpose.msra.mxu0 %v1563
        %1567 = vmatprep.subr.bf16.mxu0 0
        %1568 = vmatpush1.bf16.xpose.msra.mxu0 0
        %1569 = vmatprep.subr.bf16.mxu0 0
        %1570 = vmatpush1.bf16.xpose.msra.mxu0 0
        %1571 = vmatprep.subr.bf16.mxu0 0
        %1572 = vmatpush1.bf16.xpose.msra.mxu0 0
        %1573 = vmatprep.subr.bf16.mxu0 0
        %1574 = vmatpush1.bf16.xpose.msra.mxu0 0
        %1575 = vmatprep.subr.bf16.mxu0 0
        %1576 = vmatpush1.bf16.xpose.msra.mxu0 0
        %1577 = vmatprep.subr.bf16.mxu0 0
        %1578 = vmatpush1.bf16.xpose.msra.mxu0 0
        %1579 = vmatprep.subr.bf16.mxu0 0
        %1580 = vmatpush1.bf16.xpose.msra.mxu0 0
        %1581 = vmatprep.subr.bf16.mxu0 0
        %1582 = vmatpush1.bf16.xpose.msra.mxu0 0
        %1583 = vmatprep.subr.bf16.mxu0 0
        %1584 = vmatpush1.bf16.xpose.msra.mxu0 0
        %1585 = vmatprep.subr.bf16.mxu0 0
        %1586 = vmatpush1.bf16.xpose.msra.mxu0 0
        %1587 = vmatprep.subr.bf16.mxu0 0
        %1588 = vmatpush1.bf16.xpose.msra.mxu0 0
        %1589 = vmatprep.subr.bf16.mxu0 0
        %1590 = vmatpush1.bf16.xpose.msra.mxu0 0
        %1591 = vmatprep.subr.bf16.mxu0 0
        %1592 = vmatpush1.bf16.xpose.msra.mxu0 0
        %1593 = vmatprep.subr.bf16.mxu0 0
        %1594 = vmatpush1.bf16.xpose.msra.mxu0 0
        %1595 = vmatprep.subr.bf16.mxu0 0
        %1596 = vmatpush1.bf16.xpose.msra.mxu0 0
        %1597 = vmatprep.mubr.bf16.mxu0 0
        %1598 = vmatmul.mubr.bf16.gmra.mrb[0].mxu0 %v1560
        %v1599 = vpop.f32.mrb[0].mxu0
        %v1600 = vadd.f32 %v666, %v1599
        %v1601 = vpop.f32.mrb[0].mxu0
        %v1602 = vpop.f32.mrb[0].mxu0
        %v1603 = vpop.f32.mrb[0].mxu0
        %1604 = vdwg.mxu0
        %v1605 = vsel %vm714, %v1600, -inf
        %1606 = vmax.xlane.f32.xlu0 %v1605
        %v1607 = vpop.xlane.xlu0 %1606
        %v1608 = vsub.f32 %v1600, %v1607
        %v1609 = vmul.f32 %v1608, 1.442695
        %v1610 = vpow.pop %v1609
        %v1611 = vsel %vm714, %v1610, 0.0
        %1612 = vadd.xlane.f32.xlu0 %v1611
        %v1613 = vpop.xlane.xlu0 %1612
        %v1614 = vrcp.pop %v1613
        %v1615 = vmul.f32 %v1610, %v1614
        %v1616 = vpack.c.bf16 %v1615, %v1615
        %1617 = vrot.lane.b32.xlu0 %v665, 96
        %v1618 = vpop.permute.xlu0 %1617
        %v1620 = vsel %vm714, %v1616, 0
        %v1623 = vsel %vm730, %v1618, 0
        %1625 = vmatprep.subr.bf16.mxu0 0
        %1626 = vmatpush1.bf16.msra.mxu0 %v1623
        %1627 = vmatprep.subr.bf16.mxu0 0
        %1628 = vmatpush1.bf16.msra.mxu0 0
        %1629 = vmatprep.subr.bf16.mxu0 0
        %1630 = vmatpush1.bf16.msra.mxu0 0
        %1631 = vmatprep.subr.bf16.mxu0 0
        %1632 = vmatpush1.bf16.msra.mxu0 0
        %1633 = vmatprep.subr.bf16.mxu0 0
        %1634 = vmatpush1.bf16.msra.mxu0 0
        %1635 = vmatprep.subr.bf16.mxu0 0
        %1636 = vmatpush1.bf16.msra.mxu0 0
        %1637 = vmatprep.subr.bf16.mxu0 0
        %1638 = vmatpush1.bf16.msra.mxu0 0
        %1639 = vmatprep.subr.bf16.mxu0 0
        %1640 = vmatpush1.bf16.msra.mxu0 0
        %1641 = vmatprep.subr.bf16.mxu0 0
        %1642 = vmatpush1.bf16.msra.mxu0 0
        %1643 = vmatprep.subr.bf16.mxu0 0
        %1644 = vmatpush1.bf16.msra.mxu0 0
        %1645 = vmatprep.subr.bf16.mxu0 0
        %1646 = vmatpush1.bf16.msra.mxu0 0
        %1647 = vmatprep.subr.bf16.mxu0 0
        %1648 = vmatpush1.bf16.msra.mxu0 0
        %1649 = vmatprep.subr.bf16.mxu0 0
        %1650 = vmatpush1.bf16.msra.mxu0 0
        %1651 = vmatprep.subr.bf16.mxu0 0
        %1652 = vmatpush1.bf16.msra.mxu0 0
        %1653 = vmatprep.subr.bf16.mxu0 0
        %1654 = vmatpush1.bf16.msra.mxu0 0
        %1655 = vmatprep.subr.bf16.mxu0 0
        %1656 = vmatpush1.bf16.msra.mxu0 0
        %1657 = vmatprep.mubr.bf16.mxu0 0
        %1658 = vmatmul.mubr.bf16.gmra.mrb[0].mxu0 %v1620
        %v1659 = vpop.f32.mrb[0].mxu0
        %v1660 = vadd.f32 0.0, %v1659
        %v1661 = vpop.f32.mrb[0].mxu0
        %v1662 = vpop.f32.mrb[0].mxu0
        %v1663 = vpop.f32.mrb[0].mxu0
        %1664 = vdwg.mxu0
        %v1665 = vpack.c.bf16 %v1660, %v1660
        %1666 = vrot.lane.b32.xlu0 %v521, 92
        %v1667 = vpop.permute.xlu0 %1666
        %1668 = vrot.lane.b32.xlu0 %v593, 92
        %v1669 = vpop.permute.xlu0 %1668
        %v1671 = vsel %vm667, %v1667, 0
        %v1674 = vsel %vm667, %v1669, 0
        %1676 = vmatprep.subr.bf16.mxu0 0
        %1677 = vmatpush1.bf16.xpose.msra.mxu0 %v1674
        %1678 = vmatprep.subr.bf16.mxu0 0
        %1679 = vmatpush1.bf16.xpose.msra.mxu0 0
        %1680 = vmatprep.subr.bf16.mxu0 0
        %1681 = vmatpush1.bf16.xpose.msra.mxu0 0
        %1682 = vmatprep.subr.bf16.mxu0 0
        %1683 = vmatpush1.bf16.xpose.msra.mxu0 0
        %1684 = vmatprep.subr.bf16.mxu0 0
        %1685 = vmatpush1.bf16.xpose.msra.mxu0 0
        %1686 = vmatprep.subr.bf16.mxu0 0
        %1687 = vmatpush1.bf16.xpose.msra.mxu0 0
        %1688 = vmatprep.subr.bf16.mxu0 0
        %1689 = vmatpush1.bf16.xpose.msra.mxu0 0
        %1690 = vmatprep.subr.bf16.mxu0 0
        %1691 = vmatpush1.bf16.xpose.msra.mxu0 0
        %1692 = vmatprep.subr.bf16.mxu0 0
        %1693 = vmatpush1.bf16.xpose.msra.mxu0 0
        %1694 = vmatprep.subr.bf16.mxu0 0
        %1695 = vmatpush1.bf16.xpose.msra.mxu0 0
        %1696 = vmatprep.subr.bf16.mxu0 0
        %1697 = vmatpush1.bf16.xpose.msra.mxu0 0
        %1698 = vmatprep.subr.bf16.mxu0 0
        %1699 = vmatpush1.bf16.xpose.msra.mxu0 0
        %1700 = vmatprep.subr.bf16.mxu0 0
        %1701 = vmatpush1.bf16.xpose.msra.mxu0 0
        %1702 = vmatprep.subr.bf16.mxu0 0
        %1703 = vmatpush1.bf16.xpose.msra.mxu0 0
        %1704 = vmatprep.subr.bf16.mxu0 0
        %1705 = vmatpush1.bf16.xpose.msra.mxu0 0
        %1706 = vmatprep.subr.bf16.mxu0 0
        %1707 = vmatpush1.bf16.xpose.msra.mxu0 0
        %1708 = vmatprep.mubr.bf16.mxu0 0
        %1709 = vmatmul.mubr.bf16.gmra.mrb[0].mxu0 %v1671
        %v1710 = vpop.f32.mrb[0].mxu0
        %v1711 = vadd.f32 %v666, %v1710
        %v1712 = vpop.f32.mrb[0].mxu0
        %v1713 = vpop.f32.mrb[0].mxu0
        %v1714 = vpop.f32.mrb[0].mxu0
        %1715 = vdwg.mxu0
        %v1716 = vsel %vm714, %v1711, -inf
        %1717 = vmax.xlane.f32.xlu0 %v1716
        %v1718 = vpop.xlane.xlu0 %1717
        %v1719 = vsub.f32 %v1711, %v1718
        %v1720 = vmul.f32 %v1719, 1.442695
        %v1721 = vpow.pop %v1720
        %v1722 = vsel %vm714, %v1721, 0.0
        %1723 = vadd.xlane.f32.xlu0 %v1722
        %v1724 = vpop.xlane.xlu0 %1723
        %v1725 = vrcp.pop %v1724
        %v1726 = vmul.f32 %v1721, %v1725
        %v1727 = vpack.c.bf16 %v1726, %v1726
        %1728 = vrot.lane.b32.xlu0 %v665, 92
        %v1729 = vpop.permute.xlu0 %1728
        %v1731 = vsel %vm714, %v1727, 0
        %v1734 = vsel %vm730, %v1729, 0
        %1736 = vmatprep.subr.bf16.mxu0 0
        %1737 = vmatpush1.bf16.msra.mxu0 %v1734
        %1738 = vmatprep.subr.bf16.mxu0 0
        %1739 = vmatpush1.bf16.msra.mxu0 0
        %1740 = vmatprep.subr.bf16.mxu0 0
        %1741 = vmatpush1.bf16.msra.mxu0 0
        %1742 = vmatprep.subr.bf16.mxu0 0
        %1743 = vmatpush1.bf16.msra.mxu0 0
        %1744 = vmatprep.subr.bf16.mxu0 0
        %1745 = vmatpush1.bf16.msra.mxu0 0
        %1746 = vmatprep.subr.bf16.mxu0 0
        %1747 = vmatpush1.bf16.msra.mxu0 0
        %1748 = vmatprep.subr.bf16.mxu0 0
        %1749 = vmatpush1.bf16.msra.mxu0 0
        %1750 = vmatprep.subr.bf16.mxu0 0
        %1751 = vmatpush1.bf16.msra.mxu0 0
        %1752 = vmatprep.subr.bf16.mxu0 0
        %1753 = vmatpush1.bf16.msra.mxu0 0
        %1754 = vmatprep.subr.bf16.mxu0 0
        %1755 = vmatpush1.bf16.msra.mxu0 0
        %1756 = vmatprep.subr.bf16.mxu0 0
        %1757 = vmatpush1.bf16.msra.mxu0 0
        %1758 = vmatprep.subr.bf16.mxu0 0
        %1759 = vmatpush1.bf16.msra.mxu0 0
        %1760 = vmatprep.subr.bf16.mxu0 0
        %1761 = vmatpush1.bf16.msra.mxu0 0
        %1762 = vmatprep.subr.bf16.mxu0 0
        %1763 = vmatpush1.bf16.msra.mxu0 0
        %1764 = vmatprep.subr.bf16.mxu0 0
        %1765 = vmatpush1.bf16.msra.mxu0 0
        %1766 = vmatprep.subr.bf16.mxu0 0
        %1767 = vmatpush1.bf16.msra.mxu0 0
        %1768 = vmatprep.mubr.bf16.mxu0 0
        %1769 = vmatmul.mubr.bf16.gmra.mrb[0].mxu0 %v1731
        %v1770 = vpop.f32.mrb[0].mxu0
        %v1771 = vadd.f32 0.0, %v1770
        %v1772 = vpop.f32.mrb[0].mxu0
        %v1773 = vpop.f32.mrb[0].mxu0
        %v1774 = vpop.f32.mrb[0].mxu0
        %1775 = vdwg.mxu0
        %v1776 = vpack.c.bf16 %v1771, %v1771
        %1777 = vrot.lane.b32.xlu0 %v521, 88
        %v1778 = vpop.permute.xlu0 %1777
        %1779 = vrot.lane.b32.xlu0 %v593, 88
        %v1780 = vpop.permute.xlu0 %1779
        %v1782 = vsel %vm667, %v1778, 0
        %v1785 = vsel %vm667, %v1780, 0
        %1787 = vmatprep.subr.bf16.mxu0 0
        %1788 = vmatpush1.bf16.xpose.msra.mxu0 %v1785
        %1789 = vmatprep.subr.bf16.mxu0 0
        %1790 = vmatpush1.bf16.xpose.msra.mxu0 0
        %1791 = vmatprep.subr.bf16.mxu0 0
        %1792 = vmatpush1.bf16.xpose.msra.mxu0 0
        %1793 = vmatprep.subr.bf16.mxu0 0
        %1794 = vmatpush1.bf16.xpose.msra.mxu0 0
        %1795 = vmatprep.subr.bf16.mxu0 0
        %1796 = vmatpush1.bf16.xpose.msra.mxu0 0
        %1797 = vmatprep.subr.bf16.mxu0 0
        %1798 = vmatpush1.bf16.xpose.msra.mxu0 0
        %1799 = vmatprep.subr.bf16.mxu0 0
        %1800 = vmatpush1.bf16.xpose.msra.mxu0 0
        %1801 = vmatprep.subr.bf16.mxu0 0
        %1802 = vmatpush1.bf16.xpose.msra.mxu0 0
        %1803 = vmatprep.subr.bf16.mxu0 0
        %1804 = vmatpush1.bf16.xpose.msra.mxu0 0
        %1805 = vmatprep.subr.bf16.mxu0 0
        %1806 = vmatpush1.bf16.xpose.msra.mxu0 0
        %1807 = vmatprep.subr.bf16.mxu0 0
        %1808 = vmatpush1.bf16.xpose.msra.mxu0 0
        %1809 = vmatprep.subr.bf16.mxu0 0
        %1810 = vmatpush1.bf16.xpose.msra.mxu0 0
        %1811 = vmatprep.subr.bf16.mxu0 0
        %1812 = vmatpush1.bf16.xpose.msra.mxu0 0
        %1813 = vmatprep.subr.bf16.mxu0 0
        %1814 = vmatpush1.bf16.xpose.msra.mxu0 0
        %1815 = vmatprep.subr.bf16.mxu0 0
        %1816 = vmatpush1.bf16.xpose.msra.mxu0 0
        %1817 = vmatprep.subr.bf16.mxu0 0
        %1818 = vmatpush1.bf16.xpose.msra.mxu0 0
        %1819 = vmatprep.mubr.bf16.mxu0 0
        %1820 = vmatmul.mubr.bf16.gmra.mrb[0].mxu0 %v1782
        %v1821 = vpop.f32.mrb[0].mxu0
        %v1822 = vadd.f32 %v666, %v1821
        %v1823 = vpop.f32.mrb[0].mxu0
        %v1824 = vpop.f32.mrb[0].mxu0
        %v1825 = vpop.f32.mrb[0].mxu0
        %1826 = vdwg.mxu0
        %v1827 = vsel %vm714, %v1822, -inf
        %1828 = vmax.xlane.f32.xlu0 %v1827
        %v1829 = vpop.xlane.xlu0 %1828
        %v1830 = vsub.f32 %v1822, %v1829
        %v1831 = vmul.f32 %v1830, 1.442695
        %v1832 = vpow.pop %v1831
        %v1833 = vsel %vm714, %v1832, 0.0
        %1834 = vadd.xlane.f32.xlu0 %v1833
        %v1835 = vpop.xlane.xlu0 %1834
        %v1836 = vrcp.pop %v1835
        %v1837 = vmul.f32 %v1832, %v1836
        %v1838 = vpack.c.bf16 %v1837, %v1837
        %1839 = vrot.lane.b32.xlu0 %v665, 88
        %v1840 = vpop.permute.xlu0 %1839
        %v1842 = vsel %vm714, %v1838, 0
        %v1845 = vsel %vm730, %v1840, 0
        %1847 = vmatprep.subr.bf16.mxu0 0
        %1848 = vmatpush1.bf16.msra.mxu0 %v1845
        %1849 = vmatprep.subr.bf16.mxu0 0
        %1850 = vmatpush1.bf16.msra.mxu0 0
        %1851 = vmatprep.subr.bf16.mxu0 0
        %1852 = vmatpush1.bf16.msra.mxu0 0
        %1853 = vmatprep.subr.bf16.mxu0 0
        %1854 = vmatpush1.bf16.msra.mxu0 0
        %1855 = vmatprep.subr.bf16.mxu0 0
        %1856 = vmatpush1.bf16.msra.mxu0 0
        %1857 = vmatprep.subr.bf16.mxu0 0
        %1858 = vmatpush1.bf16.msra.mxu0 0
        %1859 = vmatprep.subr.bf16.mxu0 0
        %1860 = vmatpush1.bf16.msra.mxu0 0
        %1861 = vmatprep.subr.bf16.mxu0 0
        %1862 = vmatpush1.bf16.msra.mxu0 0
        %1863 = vmatprep.subr.bf16.mxu0 0
        %1864 = vmatpush1.bf16.msra.mxu0 0
        %1865 = vmatprep.subr.bf16.mxu0 0
        %1866 = vmatpush1.bf16.msra.mxu0 0
        %1867 = vmatprep.subr.bf16.mxu0 0
        %1868 = vmatpush1.bf16.msra.mxu0 0
        %1869 = vmatprep.subr.bf16.mxu0 0
        %1870 = vmatpush1.bf16.msra.mxu0 0
        %1871 = vmatprep.subr.bf16.mxu0 0
        %1872 = vmatpush1.bf16.msra.mxu0 0
        %1873 = vmatprep.subr.bf16.mxu0 0
        %1874 = vmatpush1.bf16.msra.mxu0 0
        %1875 = vmatprep.subr.bf16.mxu0 0
        %1876 = vmatpush1.bf16.msra.mxu0 0
        %1877 = vmatprep.subr.bf16.mxu0 0
        %1878 = vmatpush1.bf16.msra.mxu0 0
        %1879 = vmatprep.mubr.bf16.mxu0 0
        %1880 = vmatmul.mubr.bf16.gmra.mrb[0].mxu0 %v1842
        %v1881 = vpop.f32.mrb[0].mxu0
        %v1882 = vadd.f32 0.0, %v1881
        %v1883 = vpop.f32.mrb[0].mxu0
        %v1884 = vpop.f32.mrb[0].mxu0
        %v1885 = vpop.f32.mrb[0].mxu0
        %1886 = vdwg.mxu0
        %v1887 = vpack.c.bf16 %v1882, %v1882
        %1888 = vrot.lane.b32.xlu0 %v521, 84
        %v1889 = vpop.permute.xlu0 %1888
        %1890 = vrot.lane.b32.xlu0 %v593, 84
        %v1891 = vpop.permute.xlu0 %1890
        %v1893 = vsel %vm667, %v1889, 0
        %v1896 = vsel %vm667, %v1891, 0
        %1898 = vmatprep.subr.bf16.mxu0 0
        %1899 = vmatpush1.bf16.xpose.msra.mxu0 %v1896
        %1900 = vmatprep.subr.bf16.mxu0 0
        %1901 = vmatpush1.bf16.xpose.msra.mxu0 0
        %1902 = vmatprep.subr.bf16.mxu0 0
        %1903 = vmatpush1.bf16.xpose.msra.mxu0 0
        %1904 = vmatprep.subr.bf16.mxu0 0
        %1905 = vmatpush1.bf16.xpose.msra.mxu0 0
        %1906 = vmatprep.subr.bf16.mxu0 0
        %1907 = vmatpush1.bf16.xpose.msra.mxu0 0
        %1908 = vmatprep.subr.bf16.mxu0 0
        %1909 = vmatpush1.bf16.xpose.msra.mxu0 0
        %1910 = vmatprep.subr.bf16.mxu0 0
        %1911 = vmatpush1.bf16.xpose.msra.mxu0 0
        %1912 = vmatprep.subr.bf16.mxu0 0
        %1913 = vmatpush1.bf16.xpose.msra.mxu0 0
        %1914 = vmatprep.subr.bf16.mxu0 0
        %1915 = vmatpush1.bf16.xpose.msra.mxu0 0
        %1916 = vmatprep.subr.bf16.mxu0 0
        %1917 = vmatpush1.bf16.xpose.msra.mxu0 0
        %1918 = vmatprep.subr.bf16.mxu0 0
        %1919 = vmatpush1.bf16.xpose.msra.mxu0 0
        %1920 = vmatprep.subr.bf16.mxu0 0
        %1921 = vmatpush1.bf16.xpose.msra.mxu0 0
        %1922 = vmatprep.subr.bf16.mxu0 0
        %1923 = vmatpush1.bf16.xpose.msra.mxu0 0
        %1924 = vmatprep.subr.bf16.mxu0 0
        %1925 = vmatpush1.bf16.xpose.msra.mxu0 0
        %1926 = vmatprep.subr.bf16.mxu0 0
        %1927 = vmatpush1.bf16.xpose.msra.mxu0 0
        %1928 = vmatprep.subr.bf16.mxu0 0
        %1929 = vmatpush1.bf16.xpose.msra.mxu0 0
        %1930 = vmatprep.mubr.bf16.mxu0 0
        %1931 = vmatmul.mubr.bf16.gmra.mrb[0].mxu0 %v1893
        %v1932 = vpop.f32.mrb[0].mxu0
        %v1933 = vadd.f32 %v666, %v1932
        %v1934 = vpop.f32.mrb[0].mxu0
        %v1935 = vpop.f32.mrb[0].mxu0
        %v1936 = vpop.f32.mrb[0].mxu0
        %1937 = vdwg.mxu0
        %v1938 = vsel %vm714, %v1933, -inf
        %1939 = vmax.xlane.f32.xlu0 %v1938
        %v1940 = vpop.xlane.xlu0 %1939
        %v1941 = vsub.f32 %v1933, %v1940
        %v1942 = vmul.f32 %v1941, 1.442695
        %v1943 = vpow.pop %v1942
        %v1944 = vsel %vm714, %v1943, 0.0
        %1945 = vadd.xlane.f32.xlu0 %v1944
        %v1946 = vpop.xlane.xlu0 %1945
        %v1947 = vrcp.pop %v1946
        %v1948 = vmul.f32 %v1943, %v1947
        %v1949 = vpack.c.bf16 %v1948, %v1948
        %1950 = vrot.lane.b32.xlu0 %v665, 84
        %v1951 = vpop.permute.xlu0 %1950
        %v1953 = vsel %vm714, %v1949, 0
        %v1956 = vsel %vm730, %v1951, 0
        %1958 = vmatprep.subr.bf16.mxu0 0
        %1959 = vmatpush1.bf16.msra.mxu0 %v1956
        %1960 = vmatprep.subr.bf16.mxu0 0
        %1961 = vmatpush1.bf16.msra.mxu0 0
        %1962 = vmatprep.subr.bf16.mxu0 0
        %1963 = vmatpush1.bf16.msra.mxu0 0
        %1964 = vmatprep.subr.bf16.mxu0 0
        %1965 = vmatpush1.bf16.msra.mxu0 0
        %1966 = vmatprep.subr.bf16.mxu0 0
        %1967 = vmatpush1.bf16.msra.mxu0 0
        %1968 = vmatprep.subr.bf16.mxu0 0
        %1969 = vmatpush1.bf16.msra.mxu0 0
        %1970 = vmatprep.subr.bf16.mxu0 0
        %1971 = vmatpush1.bf16.msra.mxu0 0
        %1972 = vmatprep.subr.bf16.mxu0 0
        %1973 = vmatpush1.bf16.msra.mxu0 0
        %1974 = vmatprep.subr.bf16.mxu0 0
        %1975 = vmatpush1.bf16.msra.mxu0 0
        %1976 = vmatprep.subr.bf16.mxu0 0
        %1977 = vmatpush1.bf16.msra.mxu0 0
        %1978 = vmatprep.subr.bf16.mxu0 0
        %1979 = vmatpush1.bf16.msra.mxu0 0
        %1980 = vmatprep.subr.bf16.mxu0 0
        %1981 = vmatpush1.bf16.msra.mxu0 0
        %1982 = vmatprep.subr.bf16.mxu0 0
        %1983 = vmatpush1.bf16.msra.mxu0 0
        %1984 = vmatprep.subr.bf16.mxu0 0
        %1985 = vmatpush1.bf16.msra.mxu0 0
        %1986 = vmatprep.subr.bf16.mxu0 0
        %1987 = vmatpush1.bf16.msra.mxu0 0
        %1988 = vmatprep.subr.bf16.mxu0 0
        %1989 = vmatpush1.bf16.msra.mxu0 0
        %1990 = vmatprep.mubr.bf16.mxu0 0
        %1991 = vmatmul.mubr.bf16.gmra.mrb[0].mxu0 %v1953
        %v1992 = vpop.f32.mrb[0].mxu0
        %v1993 = vadd.f32 0.0, %v1992
        %v1994 = vpop.f32.mrb[0].mxu0
        %v1995 = vpop.f32.mrb[0].mxu0
        %v1996 = vpop.f32.mrb[0].mxu0
        %1997 = vdwg.mxu0
        %v1998 = vpack.c.bf16 %v1993, %v1993
        %2000 = vrot.lane.b32.xlu0 %v888, 4
        %v2001 = vpop.permute.xlu0 %2000
        %2003 = vrot.lane.b32.xlu0 %v999, 8
        %v2004 = vpop.permute.xlu0 %2003
        %2006 = vrot.lane.b32.xlu0 %v1110, 12
        %v2007 = vpop.permute.xlu0 %2006
        %2009 = vrot.lane.b32.xlu0 %v1221, 16
        %v2010 = vpop.permute.xlu0 %2009
        %2012 = vrot.lane.b32.xlu0 %v1332, 20
        %v2013 = vpop.permute.xlu0 %2012
        %2015 = vrot.lane.b32.xlu0 %v1443, 24
        %v2016 = vpop.permute.xlu0 %2015
        %2018 = vrot.lane.b32.xlu0 %v1554, 28
        %v2019 = vpop.permute.xlu0 %2018
        %2021 = vrot.lane.b32.xlu0 %v1665, 32
        %v2022 = vpop.permute.xlu0 %2021
        %2024 = vrot.lane.b32.xlu0 %v1776, 36
        %v2025 = vpop.permute.xlu0 %2024
        %2027 = vrot.lane.b32.xlu0 %v1887, 40
        %v2028 = vpop.permute.xlu0 %2027
        %2030 = vrot.lane.b32.xlu0 %v1998, 44
        %v2031 = vpop.permute.xlu0 %2030
        %v2034 = vsel %vm667, %v774, %v2001
        %v2036 = vsel %vm714, %v2034, %v2004
        %vm2037 = vcmask 97280
        %v2039 = vsel %vm2037, %v2036, %v2007
        %vm2040 = vcmask 130048
        %v2042 = vsel %vm2040, %v2039, %v2010
        %vm2043 = vcmask 162816
        %v2045 = vsel %vm2043, %v2042, %v2013
        %vm2046 = vcmask 195584
        %v2048 = vsel %vm2046, %v2045, %v2016
        %vm2049 = vcmask 228352
        %v2051 = vsel %vm2049, %v2048, %v2019
        %vm2052 = vcmask 261120
        %v2054 = vsel %vm2052, %v2051, %v2022
        %vm2055 = vcmask 293888
        %v2057 = vsel %vm2055, %v2054, %v2025
        %vm2058 = vcmask 326656
        %v2060 = vsel %vm2058, %v2057, %v2028
        %vm2061 = vcmask 359424
        %v2063 = vsel %vm2061, %v2060, %v2031
        %v2064 = vld [vmem:[%s7] sm:$0xf]
        %v2065 = vld [vmem:[%s7 + $0x4] sm:$0xf]
        %v2066 = vld [vmem:[%s7 + $0x8] sm:$0xf]
        %v2067 = vld [vmem:[%s7 + $0xc] sm:$0xf]
        %v2068 = vld [vmem:[%s7 + $0x10] sm:$0xf]
        %v2069 = vld [vmem:[%s7 + $0x14] sm:$0xf]
        %v2070 = vld [vmem:[#allocation11] sm:$0x1]
        %v2072 = vlaneseq
        %v2073 = vshrl.u32 %v2072, 7
        %v2074 = vsub.s32 0, %v2073
        %v2075 = vrot.slane %v2070, %v2074
        %v2083 = vunpack.c.l.b16 %v2064
        %v2084 = vunpack.c.l.b16 %v2065
        %v2085 = vunpack.c.l.b16 %v2066
        %v2086 = vunpack.c.l.b16 %v2067
        %v2087 = vunpack.c.l.b16 %v2068
        %v2088 = vunpack.c.l.b16 %v2069
        %v2089 = vpack.c.b16 %v2084, %v2083
        %v2090 = vpack.c.b16 %v2086, %v2085
        %v2091 = vpack.c.b16 %v2088, %v2087
        %v2095 = vsel %vm477, %v2063, 0
        %2097 = vmatprep.subr.bf16.mxu0 0
        %2098 = vmatpush1.bf16.msra.mxu0 %v2089
        %2099 = vmatprep.subr.bf16.mxu0 0
        %2100 = vmatpush1.bf16.msra.mxu0 %v2090
        %2101 = vmatprep.subr.bf16.mxu0 0
        %2102 = vmatpush1.bf16.msra.mxu0 %v2091
        %2103 = vmatprep.subr.bf16.mxu0 0
        %2104 = vmatpush1.bf16.msra.mxu0 0
        %2105 = vmatprep.subr.bf16.mxu0 0
        %2106 = vmatpush1.bf16.msra.mxu0 0
        %2107 = vmatprep.subr.bf16.mxu0 0
        %2108 = vmatpush1.bf16.msra.mxu0 0
        %2109 = vmatprep.subr.bf16.mxu0 0
        %2110 = vmatpush1.bf16.msra.mxu0 0
        %2111 = vmatprep.subr.bf16.mxu0 0
        %2112 = vmatpush1.bf16.msra.mxu0 0
        %2113 = vmatprep.subr.bf16.mxu0 0
        %2114 = vmatpush1.bf16.msra.mxu0 0
        %2115 = vmatprep.subr.bf16.mxu0 0
        %2116 = vmatpush1.bf16.msra.mxu0 0
        %2117 = vmatprep.subr.bf16.mxu0 0
        %2118 = vmatpush1.bf16.msra.mxu0 0
        %2119 = vmatprep.subr.bf16.mxu0 0
        %2120 = vmatpush1.bf16.msra.mxu0 0
        %2121 = vmatprep.subr.bf16.mxu0 0
        %2122 = vmatpush1.bf16.msra.mxu0 0
        %2123 = vmatprep.subr.bf16.mxu0 0
        %2124 = vmatpush1.bf16.msra.mxu0 0
        %2125 = vmatprep.subr.bf16.mxu0 0
        %2126 = vmatpush1.bf16.msra.mxu0 0
        %2127 = vmatprep.subr.bf16.mxu0 0
        %2128 = vmatpush1.bf16.msra.mxu0 0
        %2129 = vmatprep.mubr.bf16.mxu0 0
        %2130 = vmatmul.mubr.bf16.gmra.mrb[0].mxu0 %v2095
        %v2131 = vpop.f32.mrb[0].mxu0
        %v2132 = vadd.f32 %v2075, %v2131
        %v2133 = vpop.f32.mrb[0].mxu0
        %v2134 = vpop.f32.mrb[0].mxu0
        %v2135 = vpop.f32.mrb[0].mxu0
        %2136 = vdwg.mxu0
        %2137 = vst.msk [vmem:[%s443] sm:$0xff] %vm477, %v2132
        %s2138 = sand.u32 %s253, 1
        %s2139 = scalar_lea.sflag [#allocation4], %s2138
        %s2140 = sand.u32 %s253, 1
        %s2141 = smul.addr %s2140, 8
        %s2142 = scalar_lea.vmem [#allocation13], %s2141
        // Predicated region
        $region85: #{tpu_custom_call.1} parent=59 // pred_check
          %p2143 = pneg %p263
        $region86: #{tpu_custom_call.1} parent=59 // pred_check_branch
          %2145 = sbr.rel (%p2143) target = $region88
        $region87: #{tpu_custom_call.1} parent=59 // pred_region
          %s2147 = ssub.s32 128, 128
          %2148 = vsyncadd %s2139, %s2147
          %s2149 = smul.addr %s30, 128
          %s2150 = scalar_lea.hbm %s10, %s2149
          %s2152 = sshll.u32 %s2142, 4
          %s2153 = int_to_ptr.vmem [resolvable:$true] %s2152
          %2155 = dma.vmem_to_hbm [thread:$0]  %s2153, 128, %s2150, %s2139
        $region88: #{tpu_custom_call.1} parent=59 // pred_fallthru
          _
      $region60: #{tpu_custom_call.1} parent=5 // pred_fallthru
        _
      %p2156 = scmp.le.s32.totalorder 2, %s25
      // Predicated region
      $region89: #{tpu_custom_call.1} parent=5 // pred_check
        %p2157 = pneg %p2156
      $region90: #{tpu_custom_call.1} parent=5 // pred_check_branch
        %2159 = sbr.rel (%p2157) target = $region92
      $region91: #{tpu_custom_call.1} parent=5 // pred_region
        %s2160 = ssub.s32 %s25, 2
        // Predicated region
        $region93: #{tpu_custom_call.1} parent=91 // pred_check
          %p2161 = pneg %p269
        $region94: #{tpu_custom_call.1} parent=91 // pred_check_branch
          %2163 = sbr.rel (%p2161) target = $region96
        $region95: #{tpu_custom_call.1} parent=91 // pred_region
          %s2164 = sand.u32 %s254, 1
          %s2165 = scalar_lea.sflag [#allocation4], %s2164
          %s2166 = sand.u32 %s254, 1
          %s2167 = smul.addr %s2166, 8
          %s2168 = scalar_lea.vmem [#allocation13], %s2167
          %2169 = dma.done %s2165, 128
        $region96: #{tpu_custom_call.1} parent=91 // pred_fallthru
          _
      $region92: #{tpu_custom_call.1} parent=5 // pred_fallthru
        _
    $region6: #{tpu_custom_call.1} parent=1 // loop_footer
      %s29 = sadd.s32 1, %s25
    $region7: #{tpu_custom_call.1} parent=1 // loop_footer_branch
      %24 = sbr.rel target = $region3
    $region8: #{tpu_custom_call.1} parent=1 // loop_exit
      _
    %2170 = vsyncpa [#allocation3], 1
    %s2171 = scalar_lea.sflag [#allocation3], 1
    %2172 = vsyncpa %s2171, 1
    %2173 = vsyncpa [#allocation6], 1
    %2174 = vsyncpa [#allocation9], 1
    %2175 = vsyncpa [#allocation12], 1
    %2176 = vsyncpa [#allocation4], 1
    %s2177 = scalar_lea.sflag [#allocation4], 1
    %2178 = vsyncpa %s2177, 1

</llo_original>
